<compile_context>
chip_gen: v5e
topology: v5e:2x2
jax: 0.10.0
libtpu: 0.0.40
codegen_flags: <defaults>
</compile_context>

<pallas_src>
import functools

import jax
import jax.numpy as jnp
from jax.experimental import pallas as pl
from jax.experimental.pallas import tpu as pltpu

# ---------------- config (mirrors `config` / `args` of the PyTorch module) -------
VOCAB = 100
HIDDEN_SIZE = 32         # config.hidden_size
NUM_LAYER_BERT = 1       # args.num_layer_bert
USE_CHAR = False         # args.use_char
HIDDEN_DIM = 32          # args.hidden_dim (bi-LSTM output dim; per-direction 16)
HIDDEN_DIM_FFW = 64      # args.hidden_dim_ffw
NUM_LABELS = 5           # args.num_labels
MAX_SEQ_LEN = 8          # args.max_seq_len (word level)
SUBWORD_LEN = 12         # subword-level sequence length
BATCH = 2                # NOTE: per-step tiles pad to 8 sublanes, so BATCH<=8 is free

LSTM_INPUT_SIZE = NUM_LAYER_BERT * HIDDEN_SIZE           # use_char == False
LSTM_HIDDEN = HIDDEN_DIM // 2                             # per direction (H = 16)
NUM_LSTM_LAYERS = 3
GATE_WIDTH = 8 * LSTM_HIDDEN                              # 128 packed gate lanes
D1 = HIDDEN_DIM + 1                                       # biaffine augmented dim

_VMEM_SPEC = functools.partial(pl.BlockSpec, memory_space=pltpu.MemorySpace.VMEM)


# ============================ fully fused forward kernel ==========================
def _vimq_fused_kernel(x_ref, wih_ref, whh_ref, bl_ref,
                       w1_ref, b1_ref, w2_ref, b2_ref, wbi_ref, score_ref):
    B, S, T = BATCH, MAX_SEQ_LEN, MAX_SEQ_LEN
    H = LSTM_HIDDEN
    G = GATE_WIDTH                                        # 128
    C = NUM_LABELS

    # ---- hoisted per-lane constants (built once, outside every loop) ----
    # sigmoid-gate (i/f/o) columns of the packed weights were pre-scaled by 0.5
    # in pack_params, so sigmoid(z) = 0.5*tanh(z/2) + 0.5; tanh (g) lanes pass
    # through.  One tanh per step instead of tanh + exp + reciprocal.
    lane = jax.lax.broadcasted_iota(jnp.int32, (B, G), 1)
    g_lane = (lane >= 4 * H) & (lane < 6 * H)             # cell-candidate lanes
    act_scale = jnp.where(g_lane, 1.0, 0.5).astype(jnp.float32)
    act_offset = jnp.where(g_lane, 0.0, 0.5).astype(jnp.float32)

    lane_rows = jax.lax.broadcasted_iota(jnp.int32, (T * B, G), 1)
    fwd_lane = (lane_rows % (2 * H)) < H                  # forward-direction gate lanes

    # ---- 3-layer bidirectional LSTM, both directions fused per layer ----
    x2 = x_ref[...]                                       # [T*B, 32] time-major rows
    for layer in range(NUM_LSTM_LAYERS):
        wih = wih_ref[layer]                              # [32, 128]
        whh = whh_ref[layer]                              # [32, 128] block structured
        bias = bl_ref[layer]                              # [1, 128]

        # Hoisted input projection: all T steps, both directions, one matmul.
        xproj = jnp.dot(x2, wih, preferred_element_type=jnp.float32) + bias  # [T*B,128]
        # Hoisted fwd/bwd select: fwd lanes read time t, bwd lanes read T-1-t.
        xrev = jnp.concatenate(
            [xproj[(T - 1 - t) * B:(T - t) * B, :] for t in range(T)], axis=0)
        xcomb = jnp.where(fwd_lane, xproj, xrev)                              # [T*B,128]
        xins = [xcomb[t * B:(t + 1) * B, :] for t in range(T)]   # off the serial chain

        h = jnp.zeros((B, 2 * H), jnp.float32)            # [h_fwd | h_bwd]
        c = jnp.zeros((B, 2 * H), jnp.float32)
        hs = []                                           # register accumulation
        for t in range(T):
            if t == 0:                                    # h == 0 -> skip the matmul
                gates = xins[0]
            else:
                gates = xins[t] + jnp.dot(h, whh, preferred_element_type=jnp.float32)
            act = jnp.tanh(gates) * act_scale + act_offset        # single EUP pass
            i_g = act[:, 0:2 * H]                         # [i_f | i_b]
            f_g = act[:, 2 * H:4 * H]                     # [f_f | f_b]
            g_g = act[:, 4 * H:6 * H]                     # [g_f | g_b]
            o_g = act[:, 6 * H:8 * H]                     # [o_f | o_b]
            c = f_g * c + i_g * g_g
            h = o_g * jnp.tanh(c)
            hs.append(h)

        # One-time layer-output assembly (no per-step stores): time-major rows.
        h_cat = jnp.concatenate(hs, axis=0)               # fwd(t) at lanes 0:H
        h_rev = jnp.concatenate(hs[::-1], axis=0)         # bwd(t) at lanes H:2H
        x2 = jnp.concatenate([h_cat[:, 0:H], h_rev[:, H:2 * H]], axis=1)   # [T*B, 2H]

    # ---- time-major -> batch-major: single 16-row static gather, off the
    # recurrence chain (replaces 32 single-row masked stores inside it) ----
    y_bm = jnp.concatenate(
        [x2[s * B + b:s * B + b + 1, :] for b in range(B) for s in range(S)], axis=0)

    # ---- feedStart & feedEnd fused: w_2(relu(w_1(x))), dropout = identity ----
    hmid = jnp.maximum(
        jnp.dot(y_bm, w1_ref[...], preferred_element_type=jnp.float32) + b1_ref[...],
        0.0)                                                              # [B*S, 128]
    se = jnp.dot(hmid, w2_ref[...], preferred_element_type=jnp.float32) + b2_ref[...]
    # se[:, :32] = start head, se[:, 32:] = end head                      # [B*S, 64]

    # ---- biaffine: score[b, i, j, c] = [start_i;1]^T U_c [end_j;1] ----
    ones_col = jnp.ones((B * S, 1), jnp.float32)
    s_aug = jnp.concatenate([se[:, 0:2 * H], ones_col], axis=1)           # [B*S, D1]
    e_aug = jnp.concatenate([se[:, 2 * H:4 * H], ones_col], axis=1)       # [B*S, D1]

    # First contraction over d2, ALL classes at once (wbi packed as [C*D1, D1]):
    #   m2[c*D1+d1, row_j] = sum_d2 U[c,d1,d2] * e_aug[row_j, d2]
    m2 = jax.lax.dot_general(wbi_ref[...], e_aug, (((1,), (1,)), ((), ())),
                             preferred_element_type=jnp.float32)          # [C*D1, B*S]
    blocks = []
    for cls in range(C):
        u_e = m2[cls * D1:(cls + 1) * D1, :]                              # [D1, B*S]
        sc = jnp.dot(s_aug, u_e, preferred_element_type=jnp.float32)      # [B*S, B*S]
        # keep only same-batch (i, j) blocks
        blocks.append(jnp.concatenate(
            [sc[b * S:(b + 1) * S, b * S:(b + 1) * S] for b in range(B)], axis=0))
    # Lane-dense flat output: rows = b*S + i, cols = c*S + j.
    score_ref[...] = jnp.concatenate(blocks, axis=1)                      # [B*S, C*S]


def _vimq_fused(x_tm, packed):
    return pl.pallas_call(
        _vimq_fused_kernel,
        out_shape=jax.ShapeDtypeStruct(
            (BATCH * MAX_SEQ_LEN, NUM_LABELS * MAX_SEQ_LEN), jnp.float32),
        in_specs=[_VMEM_SPEC()] * 9,
        out_specs=_VMEM_SPEC(),
    )(x_tm, packed["wih"], packed["whh"], packed["b"],
      packed["w1"], packed["b1"], packed["w2"], packed["b2"], packed["wbi2"])


# =============================== weight packing ===================================
def _interleave_gates(a_f, a_b):
    """[..., 4H] fwd/bwd gate blocks (i|f|g|o) -> [..., 8H] packed layout
    [i_f i_b | f_f f_b | g_f g_b | o_f o_b] matching the [h_fwd | h_bwd] state."""
    h = a_f.shape[-1] // 4
    lead = a_f.shape[:-1]
    stacked = jnp.stack([a_f.reshape(lead + (4, h)),
                         a_b.reshape(lead + (4, h))], axis=-2)
    return stacked.reshape(lead + (8 * h,))


def pack_params(p):
    """Pack per-direction LSTM / FFN / biaffine weights into the fused-kernel
    layout.  Call ONCE outside the jitted forward (the layout is cached)."""
    assert LSTM_INPUT_SIZE == 2 * LSTM_HIDDEN, "stacked W_ih requires equal fan-in"
    H, G = LSTM_HIDDEN, GATE_WIDTH
    lane = jnp.arange(G)
    # sigmoid-gate (i/f/o) columns pre-scaled by 0.5 for the single-tanh trick.
    col_scale = jnp.where((lane >= 4 * H) & (lane < 6 * H), 1.0, 0.5).astype(jnp.float32)

    wih_l, whh_l, b_l = [], [], []
    for wih_f, whh_f, b_f, wih_b, whh_b, b_b in p["lstm"]:
        wih_l.append(_interleave_gates(wih_f, wih_b) * col_scale)          # [32, 128]
        top = _interleave_gates(whh_f, jnp.zeros_like(whh_f))              # h_fwd rows
        bot = _interleave_gates(jnp.zeros_like(whh_b), whh_b)              # h_bwd rows
        whh_l.append(jnp.concatenate([top, bot], axis=0) * col_scale)      # [32, 128]
        b_l.append(_interleave_gates(b_f, b_b) * col_scale)                # [1, 128]

    w1s, b1s, w2s, b2s = p["feed_start"]
    w1e, b1e, w2e, b2e = p["feed_end"]
    w2 = jnp.zeros((2 * HIDDEN_DIM_FFW, 2 * HIDDEN_DIM), jnp.float32)
    w2 = w2.at[:HIDDEN_DIM_FFW, :HIDDEN_DIM].set(w2s)
    w2 = w2.at[HIDDEN_DIM_FFW:, HIDDEN_DIM:].set(w2e)
    return {
        "emb": p["embedding"],                         # [V, 32]
        "wih": jnp.stack(wih_l),                       # [3, 32, 128]
        "whh": jnp.stack(whh_l),                       # [3, 32, 128]
        "b": jnp.stack(b_l),                           # [3, 1, 128]
        "w1": jnp.concatenate([w1s, w1e], axis=1),     # [32, 128]
        "b1": jnp.concatenate([b1s, b1e], axis=1),     # [1, 128]
        "w2": w2,                                      # [128, 64] block-diagonal
        "b2": jnp.concatenate([b2s, b2e], axis=1),     # [1, 64]
        "wbi2": p["biaffine"].reshape(NUM_LABELS * D1, D1),   # [C*D1, D1]
    }


# ============================== Parameter init ====================================
def init_params(key):
    state = {"key": key}

    def nxt():
        state["key"], sub = jax.random.split(state["key"])
        return sub

    def rand(shape, scale=0.1):
        return scale * jax.random.normal(nxt(), shape, dtype=jnp.float32)

    params = {}
    params["embedding"] = rand((VOCAB, LSTM_INPUT_SIZE))

    lstm_params = []
    H = LSTM_HIDDEN
    for layer in range(NUM_LSTM_LAYERS):
        d_in = LSTM_INPUT_SIZE if layer == 0 else 2 * H
        layer_p = []
        for _direction in range(2):
            wih = rand((d_in, 4 * H))                  # stored transposed vs torch
            whh = rand((H, 4 * H))
            b = rand((1, 4 * H))                       # bias_ih + bias_hh combined
            layer_p += [wih, whh, b]
        lstm_params.append(tuple(layer_p))
    params["lstm"] = lstm_params

    def ffn_init():
        return (rand((HIDDEN_DIM, HIDDEN_DIM_FFW)), rand((1, HIDDEN_DIM_FFW)),
                rand((HIDDEN_DIM_FFW, HIDDEN_DIM)), rand((1, HIDDEN_DIM)))

    params["feed_start"] = ffn_init()
    params["feed_end"] = ffn_init()
    params["biaffine"] = rand((NUM_LABELS, D1, D1))
    return params


# ================================ Forward =========================================
def vimq_forward(packed, input_ids, attention_mask, first_subword,
                 seq_len=None, char_ids=None, label=None):
    # TODO(synk): WordRep wraps a pretrained BERT encoder (+ optional char CNN);
    # it is approximated by an embedding lookup done here in the wrapper (a tiny
    # XLA gather, per the perf review). attention_mask is unused.
    del attention_mask, seq_len, char_ids, label
    B, S = first_subword.shape
    gathered_ids = jnp.take_along_axis(input_ids, first_subword, axis=1)   # [B, S]
    feats = jnp.take(packed["emb"], gathered_ids, axis=0)                  # [B, S, 32]
    x_tm = jnp.transpose(feats, (1, 0, 2)).reshape(S * B, LSTM_INPUT_SIZE)  # time-major
    raw = _vimq_fused(x_tm.astype(jnp.float32), packed)                    # [B*S, C*S]
    score = raw.reshape(B, S, NUM_LABELS, S).transpose(0, 1, 3, 2)         # [B, S, S, C]
    total_loss = 0.0
    # TODO(synk): masked CrossEntropy loss branch omitted (label=None path, loss=0).
    return score, total_loss


# ======================= pure-JAX reference (correctness) =========================
def vimq_reference(params, input_ids, first_subword):
    H = LSTM_HIDDEN
    gathered = jnp.take_along_axis(input_ids, first_subword, axis=1)
    x = jnp.take(params["embedding"], gathered, axis=0)            # [B, S, 32]

    def run_dir(x_seq, wih, whh, b, reverse):
        Tl = x_seq.shape[1]
        order = range(Tl - 1, -1, -1) if reverse else range(Tl)
        h = jnp.zeros((x_seq.shape[0], H), jnp.float32)
        c = jnp.zeros_like(h)
        outs = [None] * Tl
        for t in order:
            z = x_seq[:, t] @ wih + h @ whh + b
            i = jax.nn.sigmoid(z[:, 0:H])
            f = jax.nn.sigmoid(z[:, H:2 * H])
            g = jnp.tanh(z[:, 2 * H:3 * H])
            o = jax.nn.sigmoid(z[:, 3 * H:4 * H])
            c = f * c + i * g
            h = o * jnp.tanh(c)
            outs[t] = h
        return jnp.stack(outs, axis=1)

    for (wih_f, whh_f, b_f, wih_b, whh_b, b_b) in params["lstm"]:
        yf = run_dir(x, wih_f, whh_f, b_f, False)
        yb = run_dir(x, wih_b, whh_b, b_b, True)
        x = jnp.concatenate([yf, yb], axis=-1)                     # [B, S, 32]

    w1s, b1s, w2s, b2s = params["feed_start"]
    w1e, b1e, w2e, b2e = params["feed_end"]
    start = jnp.maximum(x @ w1s + b1s, 0.0) @ w2s + b2s
    end = jnp.maximum(x @ w1e + b1e, 0.0) @ w2e + b2e
    ones = jnp.ones(start.shape[:-1] + (1,), jnp.float32)
    s_aug = jnp.concatenate([start, ones], -1)
    e_aug = jnp.concatenate([end, ones], -1)
    return jnp.einsum("bid,cde,bje->bijc", s_aug, params["biaffine"], e_aug)


# ================================== Main ==========================================
if __name__ == "__main__":
    key = jax.random.PRNGKey(0)
    pkey, ikey, fkey = jax.random.split(key, 3)

    params = init_params(pkey)
    packed = pack_params(params)     # packed once, outside the jitted forward
    input_ids = jax.random.randint(ikey, (BATCH, SUBWORD_LEN), 0, VOCAB)
    attention_mask = jnp.ones((BATCH, SUBWORD_LEN), jnp.int32)
    first_subword = jax.random.randint(fkey, (BATCH, MAX_SEQ_LEN), 0, SUBWORD_LEN)

    fwd = jax.jit(vimq_forward)
    score, total_loss = fwd(packed, input_ids, attention_mask, first_subword)
    score = jax.block_until_ready(score)

    assert score.shape == (BATCH, MAX_SEQ_LEN, MAX_SEQ_LEN, NUM_LABELS), score.shape
    assert bool(jnp.all(jnp.isfinite(score)))

    ref = vimq_reference(params, input_ids, first_subword)
    max_diff = float(jnp.max(jnp.abs(score - ref)))
    assert max_diff < 2e-3, f"kernel/reference mismatch, max|diff|={max_diff}"
    print("KERNEL_OK")
</pallas_src>

<mosaic_0001>
module attributes {stable_mosaic.version = 11 : i64} {
  func.func @_vimq_fused_kernel(%arg0: memref<16x32xf32, #tpu.memory_space<vmem>>, %arg1: memref<3x32x128xf32, #tpu.memory_space<vmem>>, %arg2: memref<3x32x128xf32, #tpu.memory_space<vmem>>, %arg3: memref<3x1x128xf32, #tpu.memory_space<vmem>>, %arg4: memref<32x128xf32, #tpu.memory_space<vmem>>, %arg5: memref<1x128xf32, #tpu.memory_space<vmem>>, %arg6: memref<128x64xf32, #tpu.memory_space<vmem>>, %arg7: memref<1x64xf32, #tpu.memory_space<vmem>>, %arg8: memref<165x33xf32, #tpu.memory_space<vmem>>, %arg9: memref<16x40xf32, #tpu.memory_space<vmem>>) attributes {dimension_semantics = [], scalar_prefetch = 0 : i64, scratch_operands = 0 : i64, tpu.core_type = #tpu.core_type<tc>} {
    %0 = tpu.iota {dimensions = array<i32: 1>} : vector<2x128xi32>
    %c64_i32 = arith.constant 64 : i32
    %1 = vector.broadcast %c64_i32 : i32 to vector<2x128xi32>
    %2 = arith.cmpi sge, %0, %1 : vector<2x128xi32>
    %c96_i32 = arith.constant 96 : i32
    %3 = vector.broadcast %c96_i32 : i32 to vector<2x128xi32>
    %4 = arith.cmpi slt, %0, %3 : vector<2x128xi32>
    %5 = arith.andi %2, %4 : vector<2x128xi1>
    %cst = arith.constant 1.000000e+00 : f32
    %cst_0 = arith.constant 5.000000e-01 : f32
    %6 = vector.broadcast %cst : f32 to vector<2x128xf32>
    %7 = vector.broadcast %cst_0 : f32 to vector<2x128xf32>
    %8 = arith.select %5, %6, %7 : vector<2x128xi1>, vector<2x128xf32>
    %cst_1 = arith.constant 0.000000e+00 : f32
    %cst_2 = arith.constant 5.000000e-01 : f32
    %9 = vector.broadcast %cst_1 : f32 to vector<2x128xf32>
    %10 = vector.broadcast %cst_2 : f32 to vector<2x128xf32>
    %11 = arith.select %5, %9, %10 : vector<2x128xi1>, vector<2x128xf32>
    %12 = tpu.iota {dimensions = array<i32: 1>} : vector<16x128xi32>
    %c32_i32 = arith.constant 32 : i32
    %c0_i32 = arith.constant 0 : i32
    %13 = arith.cmpi eq, %c32_i32, %c0_i32 : i32
    %c1_i32 = arith.constant 1 : i32
    %14 = arith.select %13, %c1_i32, %c32_i32 : i32
    %15 = vector.broadcast %14 : i32 to vector<16x128xi32>
    %16 = arith.remsi %12, %15 : vector<16x128xi32>
    %c0_i32_3 = arith.constant 0 : i32
    %17 = vector.broadcast %c0_i32_3 : i32 to vector<16x128xi32>
    %18 = arith.cmpi ne, %16, %17 : vector<16x128xi32>
    %c0_i32_4 = arith.constant 0 : i32
    %19 = vector.broadcast %c0_i32_4 : i32 to vector<16x128xi32>
    %20 = arith.cmpi slt, %16, %19 : vector<16x128xi32>
    %c0_i32_5 = arith.constant 0 : i32
    %21 = arith.cmpi slt, %14, %c0_i32_5 : i32
    %22 = vector.broadcast %21 : i1 to vector<16x128xi1>
    %23 = vector.broadcast %22 : vector<16x128xi1> to vector<16x128xi1>
    %24 = arith.xori %20, %23 : vector<16x128xi1>
    %25 = arith.andi %24, %18 : vector<16x128xi1>
    %26 = vector.broadcast %14 : i32 to vector<16x128xi32>
    %27 = arith.addi %16, %26 : vector<16x128xi32>
    %28 = arith.select %25, %27, %16 : vector<16x128xi1>, vector<16x128xi32>
    %c16_i32 = arith.constant 16 : i32
    %29 = vector.broadcast %c16_i32 : i32 to vector<16x128xi32>
    %30 = arith.cmpi slt, %28, %29 : vector<16x128xi32>
    %c0 = arith.constant 0 : index
    %c0_6 = arith.constant 0 : index
    %31 = vector.load %arg0[%c0, %c0_6] : memref<16x32xf32, #tpu.memory_space<vmem>>, vector<16x32xf32>
    %c0_7 = arith.constant 0 : index
    %c0_8 = arith.constant 0 : index
    %c0_9 = arith.constant 0 : index
    %32 = vector.load %arg1[%c0_7, %c0_8, %c0_9] : memref<3x32x128xf32, #tpu.memory_space<vmem>>, vector<1x32x128xf32>
    %33 = vector.shape_cast %32 : vector<1x32x128xf32> to vector<32x128xf32>
    %c0_10 = arith.constant 0 : index
    %c0_11 = arith.constant 0 : index
    %c0_12 = arith.constant 0 : index
    %34 = vector.load %arg2[%c0_10, %c0_11, %c0_12] : memref<3x32x128xf32, #tpu.memory_space<vmem>>, vector<1x32x128xf32>
    %35 = vector.shape_cast %34 : vector<1x32x128xf32> to vector<32x128xf32>
    %c0_13 = arith.constant 0 : index
    %c0_14 = arith.constant 0 : index
    %c0_15 = arith.constant 0 : index
    %36 = vector.load %arg3[%c0_13, %c0_14, %c0_15] : memref<3x1x128xf32, #tpu.memory_space<vmem>>, vector<1x1x128xf32>
    %37 = vector.shape_cast %36 : vector<1x1x128xf32> to vector<1x128xf32>
    %cst_16 = arith.constant dense<0.000000e+00> : vector<16x128xf32>
    %38 = tpu.matmul %31, %33, %cst_16 {dimension_numbers = #tpu.dot_dimension_numbers<[1], [0], [0], [1], [0, 0, 1, 1], [], []>} : vector<16x32xf32>, vector<32x128xf32>, vector<16x128xf32> -> vector<16x128xf32>
    %39 = vector.broadcast %37 : vector<1x128xf32> to vector<16x128xf32>
    %40 = arith.addf %38, %39 : vector<16x128xf32>
    %41 = vector.extract_strided_slice %40 {offsets = [14, 0], sizes = [2, 128], strides = [1, 1]} : vector<16x128xf32> to vector<2x128xf32>
    %42 = vector.extract_strided_slice %40 {offsets = [12, 0], sizes = [2, 128], strides = [1, 1]} : vector<16x128xf32> to vector<2x128xf32>
    %43 = vector.extract_strided_slice %40 {offsets = [10, 0], sizes = [2, 128], strides = [1, 1]} : vector<16x128xf32> to vector<2x128xf32>
    %44 = vector.extract_strided_slice %40 {offsets = [8, 0], sizes = [2, 128], strides = [1, 1]} : vector<16x128xf32> to vector<2x128xf32>
    %45 = vector.extract_strided_slice %40 {offsets = [6, 0], sizes = [2, 128], strides = [1, 1]} : vector<16x128xf32> to vector<2x128xf32>
    %46 = vector.extract_strided_slice %40 {offsets = [4, 0], sizes = [2, 128], strides = [1, 1]} : vector<16x128xf32> to vector<2x128xf32>
    %47 = vector.extract_strided_slice %40 {offsets = [2, 0], sizes = [2, 128], strides = [1, 1]} : vector<16x128xf32> to vector<2x128xf32>
    %48 = vector.extract_strided_slice %40 {offsets = [0, 0], sizes = [2, 128], strides = [1, 1]} : vector<16x128xf32> to vector<2x128xf32>
    %49 = tpu.concatenate %41, %42, %43, %44, %45, %46, %47, %48 in 0 : vector<2x128xf32>, vector<2x128xf32>, vector<2x128xf32>, vector<2x128xf32>, vector<2x128xf32>, vector<2x128xf32>, vector<2x128xf32>, vector<2x128xf32> -> vector<16x128xf32>
    %50 = arith.select %30, %40, %49 : vector<16x128xi1>, vector<16x128xf32>
    %51 = vector.extract_strided_slice %50 {offsets = [0, 0], sizes = [2, 128], strides = [1, 1]} : vector<16x128xf32> to vector<2x128xf32>
    %52 = vector.extract_strided_slice %50 {offsets = [2, 0], sizes = [2, 128], strides = [1, 1]} : vector<16x128xf32> to vector<2x128xf32>
    %53 = vector.extract_strided_slice %50 {offsets = [4, 0], sizes = [2, 128], strides = [1, 1]} : vector<16x128xf32> to vector<2x128xf32>
    %54 = vector.extract_strided_slice %50 {offsets = [6, 0], sizes = [2, 128], strides = [1, 1]} : vector<16x128xf32> to vector<2x128xf32>
    %55 = vector.extract_strided_slice %50 {offsets = [8, 0], sizes = [2, 128], strides = [1, 1]} : vector<16x128xf32> to vector<2x128xf32>
    %56 = vector.extract_strided_slice %50 {offsets = [10, 0], sizes = [2, 128], strides = [1, 1]} : vector<16x128xf32> to vector<2x128xf32>
    %57 = vector.extract_strided_slice %50 {offsets = [12, 0], sizes = [2, 128], strides = [1, 1]} : vector<16x128xf32> to vector<2x128xf32>
    %58 = vector.extract_strided_slice %50 {offsets = [14, 0], sizes = [2, 128], strides = [1, 1]} : vector<16x128xf32> to vector<2x128xf32>
    %cst_17 = arith.constant 0.000000e+00 : f32
    %59 = vector.broadcast %cst_17 : f32 to vector<2x32xf32>
    %60 = math.tanh %51 : vector<2x128xf32>
    %61 = arith.mulf %60, %8 : vector<2x128xf32>
    %62 = arith.addf %61, %11 : vector<2x128xf32>
    %63 = vector.extract_strided_slice %62 {offsets = [0, 0], sizes = [2, 32], strides = [1, 1]} : vector<2x128xf32> to vector<2x32xf32>
    %64 = vector.extract_strided_slice %62 {offsets = [0, 32], sizes = [2, 32], strides = [1, 1]} : vector<2x128xf32> to vector<2x32xf32>
    %65 = vector.extract_strided_slice %62 {offsets = [0, 64], sizes = [2, 32], strides = [1, 1]} : vector<2x128xf32> to vector<2x32xf32>
    %66 = vector.extract_strided_slice %62 {offsets = [0, 96], sizes = [2, 32], strides = [1, 1]} : vector<2x128xf32> to vector<2x32xf32>
    %67 = arith.mulf %64, %59 : vector<2x32xf32>
    %68 = arith.mulf %63, %65 : vector<2x32xf32>
    %69 = arith.addf %67, %68 : vector<2x32xf32>
    %70 = math.tanh %69 : vector<2x32xf32>
    %71 = arith.mulf %66, %70 : vector<2x32xf32>
    %cst_18 = arith.constant dense<0.000000e+00> : vector<2x128xf32>
    %72 = tpu.matmul %71, %35, %cst_18 {dimension_numbers = #tpu.dot_dimension_numbers<[1], [0], [0], [1], [0, 0, 1, 1], [], []>} : vector<2x32xf32>, vector<32x128xf32>, vector<2x128xf32> -> vector<2x128xf32>
    %73 = arith.addf %52, %72 : vector<2x128xf32>
    %74 = math.tanh %73 : vector<2x128xf32>
    %75 = arith.mulf %74, %8 : vector<2x128xf32>
    %76 = arith.addf %75, %11 : vector<2x128xf32>
    %77 = vector.extract_strided_slice %76 {offsets = [0, 0], sizes = [2, 32], strides = [1, 1]} : vector<2x128xf32> to vector<2x32xf32>
    %78 = vector.extract_strided_slice %76 {offsets = [0, 32], sizes = [2, 32], strides = [1, 1]} : vector<2x128xf32> to vector<2x32xf32>
    %79 = vector.extract_strided_slice %76 {offsets = [0, 64], sizes = [2, 32], strides = [1, 1]} : vector<2x128xf32> to vector<2x32xf32>
    %80 = vector.extract_strided_slice %76 {offsets = [0, 96], sizes = [2, 32], strides = [1, 1]} : vector<2x128xf32> to vector<2x32xf32>
    %81 = arith.mulf %78, %69 : vector<2x32xf32>
    %82 = arith.mulf %77, %79 : vector<2x32xf32>
    %83 = arith.addf %81, %82 : vector<2x32xf32>
    %84 = math.tanh %83 : vector<2x32xf32>
    %85 = arith.mulf %80, %84 : vector<2x32xf32>
    %cst_19 = arith.constant dense<0.000000e+00> : vector<2x128xf32>
    %86 = tpu.matmul %85, %35, %cst_19 {dimension_numbers = #tpu.dot_dimension_numbers<[1], [0], [0], [1], [0, 0, 1, 1], [], []>} : vector<2x32xf32>, vector<32x128xf32>, vector<2x128xf32> -> vector<2x128xf32>
    %87 = arith.addf %53, %86 : vector<2x128xf32>
    %88 = math.tanh %87 : vector<2x128xf32>
    %89 = arith.mulf %88, %8 : vector<2x128xf32>
    %90 = arith.addf %89, %11 : vector<2x128xf32>
    %91 = vector.extract_strided_slice %90 {offsets = [0, 0], sizes = [2, 32], strides = [1, 1]} : vector<2x128xf32> to vector<2x32xf32>
    %92 = vector.extract_strided_slice %90 {offsets = [0, 32], sizes = [2, 32], strides = [1, 1]} : vector<2x128xf32> to vector<2x32xf32>
    %93 = vector.extract_strided_slice %90 {offsets = [0, 64], sizes = [2, 32], strides = [1, 1]} : vector<2x128xf32> to vector<2x32xf32>
    %94 = vector.extract_strided_slice %90 {offsets = [0, 96], sizes = [2, 32], strides = [1, 1]} : vector<2x128xf32> to vector<2x32xf32>
    %95 = arith.mulf %92, %83 : vector<2x32xf32>
    %96 = arith.mulf %91, %93 : vector<2x32xf32>
    %97 = arith.addf %95, %96 : vector<2x32xf32>
    %98 = math.tanh %97 : vector<2x32xf32>
    %99 = arith.mulf %94, %98 : vector<2x32xf32>
    %cst_20 = arith.constant dense<0.000000e+00> : vector<2x128xf32>
    %100 = tpu.matmul %99, %35, %cst_20 {dimension_numbers = #tpu.dot_dimension_numbers<[1], [0], [0], [1], [0, 0, 1, 1], [], []>} : vector<2x32xf32>, vector<32x128xf32>, vector<2x128xf32> -> vector<2x128xf32>
    %101 = arith.addf %54, %100 : vector<2x128xf32>
    %102 = math.tanh %101 : vector<2x128xf32>
    %103 = arith.mulf %102, %8 : vector<2x128xf32>
    %104 = arith.addf %103, %11 : vector<2x128xf32>
    %105 = vector.extract_strided_slice %104 {offsets = [0, 0], sizes = [2, 32], strides = [1, 1]} : vector<2x128xf32> to vector<2x32xf32>
    %106 = vector.extract_strided_slice %104 {offsets = [0, 32], sizes = [2, 32], strides = [1, 1]} : vector<2x128xf32> to vector<2x32xf32>
    %107 = vector.extract_strided_slice %104 {offsets = [0, 64], sizes = [2, 32], strides = [1, 1]} : vector<2x128xf32> to vector<2x32xf32>
    %108 = vector.extract_strided_slice %104 {offsets = [0, 96], sizes = [2, 32], strides = [1, 1]} : vector<2x128xf32> to vector<2x32xf32>
    %109 = arith.mulf %106, %97 : vector<2x32xf32>
    %110 = arith.mulf %105, %107 : vector<2x32xf32>
    %111 = arith.addf %109, %110 : vector<2x32xf32>
    %112 = math.tanh %111 : vector<2x32xf32>
    %113 = arith.mulf %108, %112 : vector<2x32xf32>
    %cst_21 = arith.constant dense<0.000000e+00> : vector<2x128xf32>
    %114 = tpu.matmul %113, %35, %cst_21 {dimension_numbers = #tpu.dot_dimension_numbers<[1], [0], [0], [1], [0, 0, 1, 1], [], []>} : vector<2x32xf32>, vector<32x128xf32>, vector<2x128xf32> -> vector<2x128xf32>
    %115 = arith.addf %55, %114 : vector<2x128xf32>
    %116 = math.tanh %115 : vector<2x128xf32>
    %117 = arith.mulf %116, %8 : vector<2x128xf32>
    %118 = arith.addf %117, %11 : vector<2x128xf32>
    %119 = vector.extract_strided_slice %118 {offsets = [0, 0], sizes = [2, 32], strides = [1, 1]} : vector<2x128xf32> to vector<2x32xf32>
    %120 = vector.extract_strided_slice %118 {offsets = [0, 32], sizes = [2, 32], strides = [1, 1]} : vector<2x128xf32> to vector<2x32xf32>
    %121 = vector.extract_strided_slice %118 {offsets = [0, 64], sizes = [2, 32], strides = [1, 1]} : vector<2x128xf32> to vector<2x32xf32>
    %122 = vector.extract_strided_slice %118 {offsets = [0, 96], sizes = [2, 32], strides = [1, 1]} : vector<2x128xf32> to vector<2x32xf32>
    %123 = arith.mulf %120, %111 : vector<2x32xf32>
    %124 = arith.mulf %119, %121 : vector<2x32xf32>
    %125 = arith.addf %123, %124 : vector<2x32xf32>
    %126 = math.tanh %125 : vector<2x32xf32>
    %127 = arith.mulf %122, %126 : vector<2x32xf32>
    %cst_22 = arith.constant dense<0.000000e+00> : vector<2x128xf32>
    %128 = tpu.matmul %127, %35, %cst_22 {dimension_numbers = #tpu.dot_dimension_numbers<[1], [0], [0], [1], [0, 0, 1, 1], [], []>} : vector<2x32xf32>, vector<32x128xf32>, vector<2x128xf32> -> vector<2x128xf32>
    %129 = arith.addf %56, %128 : vector<2x128xf32>
    %130 = math.tanh %129 : vector<2x128xf32>
    %131 = arith.mulf %130, %8 : vector<2x128xf32>
    %132 = arith.addf %131, %11 : vector<2x128xf32>
    %133 = vector.extract_strided_slice %132 {offsets = [0, 0], sizes = [2, 32], strides = [1, 1]} : vector<2x128xf32> to vector<2x32xf32>
    %134 = vector.extract_strided_slice %132 {offsets = [0, 32], sizes = [2, 32], strides = [1, 1]} : vector<2x128xf32> to vector<2x32xf32>
    %135 = vector.extract_strided_slice %132 {offsets = [0, 64], sizes = [2, 32], strides = [1, 1]} : vector<2x128xf32> to vector<2x32xf32>
    %136 = vector.extract_strided_slice %132 {offsets = [0, 96], sizes = [2, 32], strides = [1, 1]} : vector<2x128xf32> to vector<2x32xf32>
    %137 = arith.mulf %134, %125 : vector<2x32xf32>
    %138 = arith.mulf %133, %135 : vector<2x32xf32>
    %139 = arith.addf %137, %138 : vector<2x32xf32>
    %140 = math.tanh %139 : vector<2x32xf32>
    %141 = arith.mulf %136, %140 : vector<2x32xf32>
    %cst_23 = arith.constant dense<0.000000e+00> : vector<2x128xf32>
    %142 = tpu.matmul %141, %35, %cst_23 {dimension_numbers = #tpu.dot_dimension_numbers<[1], [0], [0], [1], [0, 0, 1, 1], [], []>} : vector<2x32xf32>, vector<32x128xf32>, vector<2x128xf32> -> vector<2x128xf32>
    %143 = arith.addf %57, %142 : vector<2x128xf32>
    %144 = math.tanh %143 : vector<2x128xf32>
    %145 = arith.mulf %144, %8 : vector<2x128xf32>
    %146 = arith.addf %145, %11 : vector<2x128xf32>
    %147 = vector.extract_strided_slice %146 {offsets = [0, 0], sizes = [2, 32], strides = [1, 1]} : vector<2x128xf32> to vector<2x32xf32>
    %148 = vector.extract_strided_slice %146 {offsets = [0, 32], sizes = [2, 32], strides = [1, 1]} : vector<2x128xf32> to vector<2x32xf32>
    %149 = vector.extract_strided_slice %146 {offsets = [0, 64], sizes = [2, 32], strides = [1, 1]} : vector<2x128xf32> to vector<2x32xf32>
    %150 = vector.extract_strided_slice %146 {offsets = [0, 96], sizes = [2, 32], strides = [1, 1]} : vector<2x128xf32> to vector<2x32xf32>
    %151 = arith.mulf %148, %139 : vector<2x32xf32>
    %152 = arith.mulf %147, %149 : vector<2x32xf32>
    %153 = arith.addf %151, %152 : vector<2x32xf32>
    %154 = math.tanh %153 : vector<2x32xf32>
    %155 = arith.mulf %150, %154 : vector<2x32xf32>
    %cst_24 = arith.constant dense<0.000000e+00> : vector<2x128xf32>
    %156 = tpu.matmul %155, %35, %cst_24 {dimension_numbers = #tpu.dot_dimension_numbers<[1], [0], [0], [1], [0, 0, 1, 1], [], []>} : vector<2x32xf32>, vector<32x128xf32>, vector<2x128xf32> -> vector<2x128xf32>
    %157 = arith.addf %58, %156 : vector<2x128xf32>
    %158 = math.tanh %157 : vector<2x128xf32>
    %159 = arith.mulf %158, %8 : vector<2x128xf32>
    %160 = arith.addf %159, %11 : vector<2x128xf32>
    %161 = vector.extract_strided_slice %160 {offsets = [0, 0], sizes = [2, 32], strides = [1, 1]} : vector<2x128xf32> to vector<2x32xf32>
    %162 = vector.extract_strided_slice %160 {offsets = [0, 32], sizes = [2, 32], strides = [1, 1]} : vector<2x128xf32> to vector<2x32xf32>
    %163 = vector.extract_strided_slice %160 {offsets = [0, 64], sizes = [2, 32], strides = [1, 1]} : vector<2x128xf32> to vector<2x32xf32>
    %164 = vector.extract_strided_slice %160 {offsets = [0, 96], sizes = [2, 32], strides = [1, 1]} : vector<2x128xf32> to vector<2x32xf32>
    %165 = arith.mulf %162, %153 : vector<2x32xf32>
    %166 = arith.mulf %161, %163 : vector<2x32xf32>
    %167 = arith.addf %165, %166 : vector<2x32xf32>
    %168 = math.tanh %167 : vector<2x32xf32>
    %169 = arith.mulf %164, %168 : vector<2x32xf32>
    %170 = tpu.concatenate %71, %85, %99, %113, %127, %141, %155, %169 in 0 : vector<2x32xf32>, vector<2x32xf32>, vector<2x32xf32>, vector<2x32xf32>, vector<2x32xf32>, vector<2x32xf32>, vector<2x32xf32>, vector<2x32xf32> -> vector<16x32xf32>
    %171 = tpu.concatenate %169, %155, %141, %127, %113, %99, %85, %71 in 0 : vector<2x32xf32>, vector<2x32xf32>, vector<2x32xf32>, vector<2x32xf32>, vector<2x32xf32>, vector<2x32xf32>, vector<2x32xf32>, vector<2x32xf32> -> vector<16x32xf32>
    %172 = vector.extract_strided_slice %170 {offsets = [0, 0], sizes = [16, 16], strides = [1, 1]} : vector<16x32xf32> to vector<16x16xf32>
    %173 = vector.extract_strided_slice %171 {offsets = [0, 16], sizes = [16, 16], strides = [1, 1]} : vector<16x32xf32> to vector<16x16xf32>
    %174 = tpu.concatenate %172, %173 in 1 : vector<16x16xf32>, vector<16x16xf32> -> vector<16x32xf32>
    %c1 = arith.constant 1 : index
    %c0_25 = arith.constant 0 : index
    %c0_26 = arith.constant 0 : index
    %175 = vector.load %arg1[%c1, %c0_25, %c0_26] : memref<3x32x128xf32, #tpu.memory_space<vmem>>, vector<1x32x128xf32>
    %176 = vector.shape_cast %175 : vector<1x32x128xf32> to vector<32x128xf32>
    %c1_27 = arith.constant 1 : index
    %c0_28 = arith.constant 0 : index
    %c0_29 = arith.constant 0 : index
    %177 = vector.load %arg2[%c1_27, %c0_28, %c0_29] : memref<3x32x128xf32, #tpu.memory_space<vmem>>, vector<1x32x128xf32>
    %178 = vector.shape_cast %177 : vector<1x32x128xf32> to vector<32x128xf32>
    %c1_30 = arith.constant 1 : index
    %c0_31 = arith.constant 0 : index
    %c0_32 = arith.constant 0 : index
    %179 = vector.load %arg3[%c1_30, %c0_31, %c0_32] : memref<3x1x128xf32, #tpu.memory_space<vmem>>, vector<1x1x128xf32>
    %180 = vector.shape_cast %179 : vector<1x1x128xf32> to vector<1x128xf32>
    %cst_33 = arith.constant dense<0.000000e+00> : vector<16x128xf32>
    %181 = tpu.matmul %174, %176, %cst_33 {dimension_numbers = #tpu.dot_dimension_numbers<[1], [0], [0], [1], [0, 0, 1, 1], [], []>} : vector<16x32xf32>, vector<32x128xf32>, vector<16x128xf32> -> vector<16x128xf32>
    %182 = vector.broadcast %180 : vector<1x128xf32> to vector<16x128xf32>
    %183 = arith.addf %181, %182 : vector<16x128xf32>
    %184 = vector.extract_strided_slice %183 {offsets = [14, 0], sizes = [2, 128], strides = [1, 1]} : vector<16x128xf32> to vector<2x128xf32>
    %185 = vector.extract_strided_slice %183 {offsets = [12, 0], sizes = [2, 128], strides = [1, 1]} : vector<16x128xf32> to vector<2x128xf32>
    %186 = vector.extract_strided_slice %183 {offsets = [10, 0], sizes = [2, 128], strides = [1, 1]} : vector<16x128xf32> to vector<2x128xf32>
    %187 = vector.extract_strided_slice %183 {offsets = [8, 0], sizes = [2, 128], strides = [1, 1]} : vector<16x128xf32> to vector<2x128xf32>
    %188 = vector.extract_strided_slice %183 {offsets = [6, 0], sizes = [2, 128], strides = [1, 1]} : vector<16x128xf32> to vector<2x128xf32>
    %189 = vector.extract_strided_slice %183 {offsets = [4, 0], sizes = [2, 128], strides = [1, 1]} : vector<16x128xf32> to vector<2x128xf32>
    %190 = vector.extract_strided_slice %183 {offsets = [2, 0], sizes = [2, 128], strides = [1, 1]} : vector<16x128xf32> to vector<2x128xf32>
    %191 = vector.extract_strided_slice %183 {offsets = [0, 0], sizes = [2, 128], strides = [1, 1]} : vector<16x128xf32> to vector<2x128xf32>
    %192 = tpu.concatenate %184, %185, %186, %187, %188, %189, %190, %191 in 0 : vector<2x128xf32>, vector<2x128xf32>, vector<2x128xf32>, vector<2x128xf32>, vector<2x128xf32>, vector<2x128xf32>, vector<2x128xf32>, vector<2x128xf32> -> vector<16x128xf32>
    %193 = arith.select %30, %183, %192 : vector<16x128xi1>, vector<16x128xf32>
    %194 = vector.extract_strided_slice %193 {offsets = [0, 0], sizes = [2, 128], strides = [1, 1]} : vector<16x128xf32> to vector<2x128xf32>
    %195 = vector.extract_strided_slice %193 {offsets = [2, 0], sizes = [2, 128], strides = [1, 1]} : vector<16x128xf32> to vector<2x128xf32>
    %196 = vector.extract_strided_slice %193 {offsets = [4, 0], sizes = [2, 128], strides = [1, 1]} : vector<16x128xf32> to vector<2x128xf32>
    %197 = vector.extract_strided_slice %193 {offsets = [6, 0], sizes = [2, 128], strides = [1, 1]} : vector<16x128xf32> to vector<2x128xf32>
    %198 = vector.extract_strided_slice %193 {offsets = [8, 0], sizes = [2, 128], strides = [1, 1]} : vector<16x128xf32> to vector<2x128xf32>
    %199 = vector.extract_strided_slice %193 {offsets = [10, 0], sizes = [2, 128], strides = [1, 1]} : vector<16x128xf32> to vector<2x128xf32>
    %200 = vector.extract_strided_slice %193 {offsets = [12, 0], sizes = [2, 128], strides = [1, 1]} : vector<16x128xf32> to vector<2x128xf32>
    %201 = vector.extract_strided_slice %193 {offsets = [14, 0], sizes = [2, 128], strides = [1, 1]} : vector<16x128xf32> to vector<2x128xf32>
    %cst_34 = arith.constant 0.000000e+00 : f32
    %202 = vector.broadcast %cst_34 : f32 to vector<2x32xf32>
    %203 = math.tanh %194 : vector<2x128xf32>
    %204 = arith.mulf %203, %8 : vector<2x128xf32>
    %205 = arith.addf %204, %11 : vector<2x128xf32>
    %206 = vector.extract_strided_slice %205 {offsets = [0, 0], sizes = [2, 32], strides = [1, 1]} : vector<2x128xf32> to vector<2x32xf32>
    %207 = vector.extract_strided_slice %205 {offsets = [0, 32], sizes = [2, 32], strides = [1, 1]} : vector<2x128xf32> to vector<2x32xf32>
    %208 = vector.extract_strided_slice %205 {offsets = [0, 64], sizes = [2, 32], strides = [1, 1]} : vector<2x128xf32> to vector<2x32xf32>
    %209 = vector.extract_strided_slice %205 {offsets = [0, 96], sizes = [2, 32], strides = [1, 1]} : vector<2x128xf32> to vector<2x32xf32>
    %210 = arith.mulf %207, %202 : vector<2x32xf32>
    %211 = arith.mulf %206, %208 : vector<2x32xf32>
    %212 = arith.addf %210, %211 : vector<2x32xf32>
    %213 = math.tanh %212 : vector<2x32xf32>
    %214 = arith.mulf %209, %213 : vector<2x32xf32>
    %cst_35 = arith.constant dense<0.000000e+00> : vector<2x128xf32>
    %215 = tpu.matmul %214, %178, %cst_35 {dimension_numbers = #tpu.dot_dimension_numbers<[1], [0], [0], [1], [0, 0, 1, 1], [], []>} : vector<2x32xf32>, vector<32x128xf32>, vector<2x128xf32> -> vector<2x128xf32>
    %216 = arith.addf %195, %215 : vector<2x128xf32>
    %217 = math.tanh %216 : vector<2x128xf32>
    %218 = arith.mulf %217, %8 : vector<2x128xf32>
    %219 = arith.addf %218, %11 : vector<2x128xf32>
    %220 = vector.extract_strided_slice %219 {offsets = [0, 0], sizes = [2, 32], strides = [1, 1]} : vector<2x128xf32> to vector<2x32xf32>
    %221 = vector.extract_strided_slice %219 {offsets = [0, 32], sizes = [2, 32], strides = [1, 1]} : vector<2x128xf32> to vector<2x32xf32>
    %222 = vector.extract_strided_slice %219 {offsets = [0, 64], sizes = [2, 32], strides = [1, 1]} : vector<2x128xf32> to vector<2x32xf32>
    %223 = vector.extract_strided_slice %219 {offsets = [0, 96], sizes = [2, 32], strides = [1, 1]} : vector<2x128xf32> to vector<2x32xf32>
    %224 = arith.mulf %221, %212 : vector<2x32xf32>
    %225 = arith.mulf %220, %222 : vector<2x32xf32>
    %226 = arith.addf %224, %225 : vector<2x32xf32>
    %227 = math.tanh %226 : vector<2x32xf32>
    %228 = arith.mulf %223, %227 : vector<2x32xf32>
    %cst_36 = arith.constant dense<0.000000e+00> : vector<2x128xf32>
    %229 = tpu.matmul %228, %178, %cst_36 {dimension_numbers = #tpu.dot_dimension_numbers<[1], [0], [0], [1], [0, 0, 1, 1], [], []>} : vector<2x32xf32>, vector<32x128xf32>, vector<2x128xf32> -> vector<2x128xf32>
    %230 = arith.addf %196, %229 : vector<2x128xf32>
    %231 = math.tanh %230 : vector<2x128xf32>
    %232 = arith.mulf %231, %8 : vector<2x128xf32>
    %233 = arith.addf %232, %11 : vector<2x128xf32>
    %234 = vector.extract_strided_slice %233 {offsets = [0, 0], sizes = [2, 32], strides = [1, 1]} : vector<2x128xf32> to vector<2x32xf32>
    %235 = vector.extract_strided_slice %233 {offsets = [0, 32], sizes = [2, 32], strides = [1, 1]} : vector<2x128xf32> to vector<2x32xf32>
    %236 = vector.extract_strided_slice %233 {offsets = [0, 64], sizes = [2, 32], strides = [1, 1]} : vector<2x128xf32> to vector<2x32xf32>
    %237 = vector.extract_strided_slice %233 {offsets = [0, 96], sizes = [2, 32], strides = [1, 1]} : vector<2x128xf32> to vector<2x32xf32>
    %238 = arith.mulf %235, %226 : vector<2x32xf32>
    %239 = arith.mulf %234, %236 : vector<2x32xf32>
    %240 = arith.addf %238, %239 : vector<2x32xf32>
    %241 = math.tanh %240 : vector<2x32xf32>
    %242 = arith.mulf %237, %241 : vector<2x32xf32>
    %cst_37 = arith.constant dense<0.000000e+00> : vector<2x128xf32>
    %243 = tpu.matmul %242, %178, %cst_37 {dimension_numbers = #tpu.dot_dimension_numbers<[1], [0], [0], [1], [0, 0, 1, 1], [], []>} : vector<2x32xf32>, vector<32x128xf32>, vector<2x128xf32> -> vector<2x128xf32>
    %244 = arith.addf %197, %243 : vector<2x128xf32>
    %245 = math.tanh %244 : vector<2x128xf32>
    %246 = arith.mulf %245, %8 : vector<2x128xf32>
    %247 = arith.addf %246, %11 : vector<2x128xf32>
    %248 = vector.extract_strided_slice %247 {offsets = [0, 0], sizes = [2, 32], strides = [1, 1]} : vector<2x128xf32> to vector<2x32xf32>
    %249 = vector.extract_strided_slice %247 {offsets = [0, 32], sizes = [2, 32], strides = [1, 1]} : vector<2x128xf32> to vector<2x32xf32>
    %250 = vector.extract_strided_slice %247 {offsets = [0, 64], sizes = [2, 32], strides = [1, 1]} : vector<2x128xf32> to vector<2x32xf32>
    %251 = vector.extract_strided_slice %247 {offsets = [0, 96], sizes = [2, 32], strides = [1, 1]} : vector<2x128xf32> to vector<2x32xf32>
    %252 = arith.mulf %249, %240 : vector<2x32xf32>
    %253 = arith.mulf %248, %250 : vector<2x32xf32>
    %254 = arith.addf %252, %253 : vector<2x32xf32>
    %255 = math.tanh %254 : vector<2x32xf32>
    %256 = arith.mulf %251, %255 : vector<2x32xf32>
    %cst_38 = arith.constant dense<0.000000e+00> : vector<2x128xf32>
    %257 = tpu.matmul %256, %178, %cst_38 {dimension_numbers = #tpu.dot_dimension_numbers<[1], [0], [0], [1], [0, 0, 1, 1], [], []>} : vector<2x32xf32>, vector<32x128xf32>, vector<2x128xf32> -> vector<2x128xf32>
    %258 = arith.addf %198, %257 : vector<2x128xf32>
    %259 = math.tanh %258 : vector<2x128xf32>
    %260 = arith.mulf %259, %8 : vector<2x128xf32>
    %261 = arith.addf %260, %11 : vector<2x128xf32>
    %262 = vector.extract_strided_slice %261 {offsets = [0, 0], sizes = [2, 32], strides = [1, 1]} : vector<2x128xf32> to vector<2x32xf32>
    %263 = vector.extract_strided_slice %261 {offsets = [0, 32], sizes = [2, 32], strides = [1, 1]} : vector<2x128xf32> to vector<2x32xf32>
    %264 = vector.extract_strided_slice %261 {offsets = [0, 64], sizes = [2, 32], strides = [1, 1]} : vector<2x128xf32> to vector<2x32xf32>
    %265 = vector.extract_strided_slice %261 {offsets = [0, 96], sizes = [2, 32], strides = [1, 1]} : vector<2x128xf32> to vector<2x32xf32>
    %266 = arith.mulf %263, %254 : vector<2x32xf32>
    %267 = arith.mulf %262, %264 : vector<2x32xf32>
    %268 = arith.addf %266, %267 : vector<2x32xf32>
    %269 = math.tanh %268 : vector<2x32xf32>
    %270 = arith.mulf %265, %269 : vector<2x32xf32>
    %cst_39 = arith.constant dense<0.000000e+00> : vector<2x128xf32>
    %271 = tpu.matmul %270, %178, %cst_39 {dimension_numbers = #tpu.dot_dimension_numbers<[1], [0], [0], [1], [0, 0, 1, 1], [], []>} : vector<2x32xf32>, vector<32x128xf32>, vector<2x128xf32> -> vector<2x128xf32>
    %272 = arith.addf %199, %271 : vector<2x128xf32>
    %273 = math.tanh %272 : vector<2x128xf32>
    %274 = arith.mulf %273, %8 : vector<2x128xf32>
    %275 = arith.addf %274, %11 : vector<2x128xf32>
    %276 = vector.extract_strided_slice %275 {offsets = [0, 0], sizes = [2, 32], strides = [1, 1]} : vector<2x128xf32> to vector<2x32xf32>
    %277 = vector.extract_strided_slice %275 {offsets = [0, 32], sizes = [2, 32], strides = [1, 1]} : vector<2x128xf32> to vector<2x32xf32>
    %278 = vector.extract_strided_slice %275 {offsets = [0, 64], sizes = [2, 32], strides = [1, 1]} : vector<2x128xf32> to vector<2x32xf32>
    %279 = vector.extract_strided_slice %275 {offsets = [0, 96], sizes = [2, 32], strides = [1, 1]} : vector<2x128xf32> to vector<2x32xf32>
    %280 = arith.mulf %277, %268 : vector<2x32xf32>
    %281 = arith.mulf %276, %278 : vector<2x32xf32>
    %282 = arith.addf %280, %281 : vector<2x32xf32>
    %283 = math.tanh %282 : vector<2x32xf32>
    %284 = arith.mulf %279, %283 : vector<2x32xf32>
    %cst_40 = arith.constant dense<0.000000e+00> : vector<2x128xf32>
    %285 = tpu.matmul %284, %178, %cst_40 {dimension_numbers = #tpu.dot_dimension_numbers<[1], [0], [0], [1], [0, 0, 1, 1], [], []>} : vector<2x32xf32>, vector<32x128xf32>, vector<2x128xf32> -> vector<2x128xf32>
    %286 = arith.addf %200, %285 : vector<2x128xf32>
    %287 = math.tanh %286 : vector<2x128xf32>
    %288 = arith.mulf %287, %8 : vector<2x128xf32>
    %289 = arith.addf %288, %11 : vector<2x128xf32>
    %290 = vector.extract_strided_slice %289 {offsets = [0, 0], sizes = [2, 32], strides = [1, 1]} : vector<2x128xf32> to vector<2x32xf32>
    %291 = vector.extract_strided_slice %289 {offsets = [0, 32], sizes = [2, 32], strides = [1, 1]} : vector<2x128xf32> to vector<2x32xf32>
    %292 = vector.extract_strided_slice %289 {offsets = [0, 64], sizes = [2, 32], strides = [1, 1]} : vector<2x128xf32> to vector<2x32xf32>
    %293 = vector.extract_strided_slice %289 {offsets = [0, 96], sizes = [2, 32], strides = [1, 1]} : vector<2x128xf32> to vector<2x32xf32>
    %294 = arith.mulf %291, %282 : vector<2x32xf32>
    %295 = arith.mulf %290, %292 : vector<2x32xf32>
    %296 = arith.addf %294, %295 : vector<2x32xf32>
    %297 = math.tanh %296 : vector<2x32xf32>
    %298 = arith.mulf %293, %297 : vector<2x32xf32>
    %cst_41 = arith.constant dense<0.000000e+00> : vector<2x128xf32>
    %299 = tpu.matmul %298, %178, %cst_41 {dimension_numbers = #tpu.dot_dimension_numbers<[1], [0], [0], [1], [0, 0, 1, 1], [], []>} : vector<2x32xf32>, vector<32x128xf32>, vector<2x128xf32> -> vector<2x128xf32>
    %300 = arith.addf %201, %299 : vector<2x128xf32>
    %301 = math.tanh %300 : vector<2x128xf32>
    %302 = arith.mulf %301, %8 : vector<2x128xf32>
    %303 = arith.addf %302, %11 : vector<2x128xf32>
    %304 = vector.extract_strided_slice %303 {offsets = [0, 0], sizes = [2, 32], strides = [1, 1]} : vector<2x128xf32> to vector<2x32xf32>
    %305 = vector.extract_strided_slice %303 {offsets = [0, 32], sizes = [2, 32], strides = [1, 1]} : vector<2x128xf32> to vector<2x32xf32>
    %306 = vector.extract_strided_slice %303 {offsets = [0, 64], sizes = [2, 32], strides = [1, 1]} : vector<2x128xf32> to vector<2x32xf32>
    %307 = vector.extract_strided_slice %303 {offsets = [0, 96], sizes = [2, 32], strides = [1, 1]} : vector<2x128xf32> to vector<2x32xf32>
    %308 = arith.mulf %305, %296 : vector<2x32xf32>
    %309 = arith.mulf %304, %306 : vector<2x32xf32>
    %310 = arith.addf %308, %309 : vector<2x32xf32>
    %311 = math.tanh %310 : vector<2x32xf32>
    %312 = arith.mulf %307, %311 : vector<2x32xf32>
    %313 = tpu.concatenate %214, %228, %242, %256, %270, %284, %298, %312 in 0 : vector<2x32xf32>, vector<2x32xf32>, vector<2x32xf32>, vector<2x32xf32>, vector<2x32xf32>, vector<2x32xf32>, vector<2x32xf32>, vector<2x32xf32> -> vector<16x32xf32>
    %314 = tpu.concatenate %312, %298, %284, %270, %256, %242, %228, %214 in 0 : vector<2x32xf32>, vector<2x32xf32>, vector<2x32xf32>, vector<2x32xf32>, vector<2x32xf32>, vector<2x32xf32>, vector<2x32xf32>, vector<2x32xf32> -> vector<16x32xf32>
    %315 = vector.extract_strided_slice %313 {offsets = [0, 0], sizes = [16, 16], strides = [1, 1]} : vector<16x32xf32> to vector<16x16xf32>
    %316 = vector.extract_strided_slice %314 {offsets = [0, 16], sizes = [16, 16], strides = [1, 1]} : vector<16x32xf32> to vector<16x16xf32>
    %317 = tpu.concatenate %315, %316 in 1 : vector<16x16xf32>, vector<16x16xf32> -> vector<16x32xf32>
    %c2 = arith.constant 2 : index
    %c0_42 = arith.constant 0 : index
    %c0_43 = arith.constant 0 : index
    %318 = vector.load %arg1[%c2, %c0_42, %c0_43] : memref<3x32x128xf32, #tpu.memory_space<vmem>>, vector<1x32x128xf32>
    %319 = vector.shape_cast %318 : vector<1x32x128xf32> to vector<32x128xf32>
    %c2_44 = arith.constant 2 : index
    %c0_45 = arith.constant 0 : index
    %c0_46 = arith.constant 0 : index
    %320 = vector.load %arg2[%c2_44, %c0_45, %c0_46] : memref<3x32x128xf32, #tpu.memory_space<vmem>>, vector<1x32x128xf32>
    %321 = vector.shape_cast %320 : vector<1x32x128xf32> to vector<32x128xf32>
    %c2_47 = arith.constant 2 : index
    %c0_48 = arith.constant 0 : index
    %c0_49 = arith.constant 0 : index
    %322 = vector.load %arg3[%c2_47, %c0_48, %c0_49] : memref<3x1x128xf32, #tpu.memory_space<vmem>>, vector<1x1x128xf32>
    %323 = vector.shape_cast %322 : vector<1x1x128xf32> to vector<1x128xf32>
    %cst_50 = arith.constant dense<0.000000e+00> : vector<16x128xf32>
    %324 = tpu.matmul %317, %319, %cst_50 {dimension_numbers = #tpu.dot_dimension_numbers<[1], [0], [0], [1], [0, 0, 1, 1], [], []>} : vector<16x32xf32>, vector<32x128xf32>, vector<16x128xf32> -> vector<16x128xf32>
    %325 = vector.broadcast %323 : vector<1x128xf32> to vector<16x128xf32>
    %326 = arith.addf %324, %325 : vector<16x128xf32>
    %327 = vector.extract_strided_slice %326 {offsets = [14, 0], sizes = [2, 128], strides = [1, 1]} : vector<16x128xf32> to vector<2x128xf32>
    %328 = vector.extract_strided_slice %326 {offsets = [12, 0], sizes = [2, 128], strides = [1, 1]} : vector<16x128xf32> to vector<2x128xf32>
    %329 = vector.extract_strided_slice %326 {offsets = [10, 0], sizes = [2, 128], strides = [1, 1]} : vector<16x128xf32> to vector<2x128xf32>
    %330 = vector.extract_strided_slice %326 {offsets = [8, 0], sizes = [2, 128], strides = [1, 1]} : vector<16x128xf32> to vector<2x128xf32>
    %331 = vector.extract_strided_slice %326 {offsets = [6, 0], sizes = [2, 128], strides = [1, 1]} : vector<16x128xf32> to vector<2x128xf32>
    %332 = vector.extract_strided_slice %326 {offsets = [4, 0], sizes = [2, 128], strides = [1, 1]} : vector<16x128xf32> to vector<2x128xf32>
    %333 = vector.extract_strided_slice %326 {offsets = [2, 0], sizes = [2, 128], strides = [1, 1]} : vector<16x128xf32> to vector<2x128xf32>
    %334 = vector.extract_strided_slice %326 {offsets = [0, 0], sizes = [2, 128], strides = [1, 1]} : vector<16x128xf32> to vector<2x128xf32>
    %335 = tpu.concatenate %327, %328, %329, %330, %331, %332, %333, %334 in 0 : vector<2x128xf32>, vector<2x128xf32>, vector<2x128xf32>, vector<2x128xf32>, vector<2x128xf32>, vector<2x128xf32>, vector<2x128xf32>, vector<2x128xf32> -> vector<16x128xf32>
    %336 = arith.select %30, %326, %335 : vector<16x128xi1>, vector<16x128xf32>
    %337 = vector.extract_strided_slice %336 {offsets = [0, 0], sizes = [2, 128], strides = [1, 1]} : vector<16x128xf32> to vector<2x128xf32>
    %338 = vector.extract_strided_slice %336 {offsets = [2, 0], sizes = [2, 128], strides = [1, 1]} : vector<16x128xf32> to vector<2x128xf32>
    %339 = vector.extract_strided_slice %336 {offsets = [4, 0], sizes = [2, 128], strides = [1, 1]} : vector<16x128xf32> to vector<2x128xf32>
    %340 = vector.extract_strided_slice %336 {offsets = [6, 0], sizes = [2, 128], strides = [1, 1]} : vector<16x128xf32> to vector<2x128xf32>
    %341 = vector.extract_strided_slice %336 {offsets = [8, 0], sizes = [2, 128], strides = [1, 1]} : vector<16x128xf32> to vector<2x128xf32>
    %342 = vector.extract_strided_slice %336 {offsets = [10, 0], sizes = [2, 128], strides = [1, 1]} : vector<16x128xf32> to vector<2x128xf32>
    %343 = vector.extract_strided_slice %336 {offsets = [12, 0], sizes = [2, 128], strides = [1, 1]} : vector<16x128xf32> to vector<2x128xf32>
    %344 = vector.extract_strided_slice %336 {offsets = [14, 0], sizes = [2, 128], strides = [1, 1]} : vector<16x128xf32> to vector<2x128xf32>
    %cst_51 = arith.constant 0.000000e+00 : f32
    %345 = vector.broadcast %cst_51 : f32 to vector<2x32xf32>
    %346 = math.tanh %337 : vector<2x128xf32>
    %347 = arith.mulf %346, %8 : vector<2x128xf32>
    %348 = arith.addf %347, %11 : vector<2x128xf32>
    %349 = vector.extract_strided_slice %348 {offsets = [0, 0], sizes = [2, 32], strides = [1, 1]} : vector<2x128xf32> to vector<2x32xf32>
    %350 = vector.extract_strided_slice %348 {offsets = [0, 32], sizes = [2, 32], strides = [1, 1]} : vector<2x128xf32> to vector<2x32xf32>
    %351 = vector.extract_strided_slice %348 {offsets = [0, 64], sizes = [2, 32], strides = [1, 1]} : vector<2x128xf32> to vector<2x32xf32>
    %352 = vector.extract_strided_slice %348 {offsets = [0, 96], sizes = [2, 32], strides = [1, 1]} : vector<2x128xf32> to vector<2x32xf32>
    %353 = arith.mulf %350, %345 : vector<2x32xf32>
    %354 = arith.mulf %349, %351 : vector<2x32xf32>
    %355 = arith.addf %353, %354 : vector<2x32xf32>
    %356 = math.tanh %355 : vector<2x32xf32>
    %357 = arith.mulf %352, %356 : vector<2x32xf32>
    %cst_52 = arith.constant dense<0.000000e+00> : vector<2x128xf32>
    %358 = tpu.matmul %357, %321, %cst_52 {dimension_numbers = #tpu.dot_dimension_numbers<[1], [0], [0], [1], [0, 0, 1, 1], [], []>} : vector<2x32xf32>, vector<32x128xf32>, vector<2x128xf32> -> vector<2x128xf32>
    %359 = arith.addf %338, %358 : vector<2x128xf32>
    %360 = math.tanh %359 : vector<2x128xf32>
    %361 = arith.mulf %360, %8 : vector<2x128xf32>
    %362 = arith.addf %361, %11 : vector<2x128xf32>
    %363 = vector.extract_strided_slice %362 {offsets = [0, 0], sizes = [2, 32], strides = [1, 1]} : vector<2x128xf32> to vector<2x32xf32>
    %364 = vector.extract_strided_slice %362 {offsets = [0, 32], sizes = [2, 32], strides = [1, 1]} : vector<2x128xf32> to vector<2x32xf32>
    %365 = vector.extract_strided_slice %362 {offsets = [0, 64], sizes = [2, 32], strides = [1, 1]} : vector<2x128xf32> to vector<2x32xf32>
    %366 = vector.extract_strided_slice %362 {offsets = [0, 96], sizes = [2, 32], strides = [1, 1]} : vector<2x128xf32> to vector<2x32xf32>
    %367 = arith.mulf %364, %355 : vector<2x32xf32>
    %368 = arith.mulf %363, %365 : vector<2x32xf32>
    %369 = arith.addf %367, %368 : vector<2x32xf32>
    %370 = math.tanh %369 : vector<2x32xf32>
    %371 = arith.mulf %366, %370 : vector<2x32xf32>
    %cst_53 = arith.constant dense<0.000000e+00> : vector<2x128xf32>
    %372 = tpu.matmul %371, %321, %cst_53 {dimension_numbers = #tpu.dot_dimension_numbers<[1], [0], [0], [1], [0, 0, 1, 1], [], []>} : vector<2x32xf32>, vector<32x128xf32>, vector<2x128xf32> -> vector<2x128xf32>
    %373 = arith.addf %339, %372 : vector<2x128xf32>
    %374 = math.tanh %373 : vector<2x128xf32>
    %375 = arith.mulf %374, %8 : vector<2x128xf32>
    %376 = arith.addf %375, %11 : vector<2x128xf32>
    %377 = vector.extract_strided_slice %376 {offsets = [0, 0], sizes = [2, 32], strides = [1, 1]} : vector<2x128xf32> to vector<2x32xf32>
    %378 = vector.extract_strided_slice %376 {offsets = [0, 32], sizes = [2, 32], strides = [1, 1]} : vector<2x128xf32> to vector<2x32xf32>
    %379 = vector.extract_strided_slice %376 {offsets = [0, 64], sizes = [2, 32], strides = [1, 1]} : vector<2x128xf32> to vector<2x32xf32>
    %380 = vector.extract_strided_slice %376 {offsets = [0, 96], sizes = [2, 32], strides = [1, 1]} : vector<2x128xf32> to vector<2x32xf32>
    %381 = arith.mulf %378, %369 : vector<2x32xf32>
    %382 = arith.mulf %377, %379 : vector<2x32xf32>
    %383 = arith.addf %381, %382 : vector<2x32xf32>
    %384 = math.tanh %383 : vector<2x32xf32>
    %385 = arith.mulf %380, %384 : vector<2x32xf32>
    %cst_54 = arith.constant dense<0.000000e+00> : vector<2x128xf32>
    %386 = tpu.matmul %385, %321, %cst_54 {dimension_numbers = #tpu.dot_dimension_numbers<[1], [0], [0], [1], [0, 0, 1, 1], [], []>} : vector<2x32xf32>, vector<32x128xf32>, vector<2x128xf32> -> vector<2x128xf32>
    %387 = arith.addf %340, %386 : vector<2x128xf32>
    %388 = math.tanh %387 : vector<2x128xf32>
    %389 = arith.mulf %388, %8 : vector<2x128xf32>
    %390 = arith.addf %389, %11 : vector<2x128xf32>
    %391 = vector.extract_strided_slice %390 {offsets = [0, 0], sizes = [2, 32], strides = [1, 1]} : vector<2x128xf32> to vector<2x32xf32>
    %392 = vector.extract_strided_slice %390 {offsets = [0, 32], sizes = [2, 32], strides = [1, 1]} : vector<2x128xf32> to vector<2x32xf32>
    %393 = vector.extract_strided_slice %390 {offsets = [0, 64], sizes = [2, 32], strides = [1, 1]} : vector<2x128xf32> to vector<2x32xf32>
    %394 = vector.extract_strided_slice %390 {offsets = [0, 96], sizes = [2, 32], strides = [1, 1]} : vector<2x128xf32> to vector<2x32xf32>
    %395 = arith.mulf %392, %383 : vector<2x32xf32>
    %396 = arith.mulf %391, %393 : vector<2x32xf32>
    %397 = arith.addf %395, %396 : vector<2x32xf32>
    %398 = math.tanh %397 : vector<2x32xf32>
    %399 = arith.mulf %394, %398 : vector<2x32xf32>
    %cst_55 = arith.constant dense<0.000000e+00> : vector<2x128xf32>
    %400 = tpu.matmul %399, %321, %cst_55 {dimension_numbers = #tpu.dot_dimension_numbers<[1], [0], [0], [1], [0, 0, 1, 1], [], []>} : vector<2x32xf32>, vector<32x128xf32>, vector<2x128xf32> -> vector<2x128xf32>
    %401 = arith.addf %341, %400 : vector<2x128xf32>
    %402 = math.tanh %401 : vector<2x128xf32>
    %403 = arith.mulf %402, %8 : vector<2x128xf32>
    %404 = arith.addf %403, %11 : vector<2x128xf32>
    %405 = vector.extract_strided_slice %404 {offsets = [0, 0], sizes = [2, 32], strides = [1, 1]} : vector<2x128xf32> to vector<2x32xf32>
    %406 = vector.extract_strided_slice %404 {offsets = [0, 32], sizes = [2, 32], strides = [1, 1]} : vector<2x128xf32> to vector<2x32xf32>
    %407 = vector.extract_strided_slice %404 {offsets = [0, 64], sizes = [2, 32], strides = [1, 1]} : vector<2x128xf32> to vector<2x32xf32>
    %408 = vector.extract_strided_slice %404 {offsets = [0, 96], sizes = [2, 32], strides = [1, 1]} : vector<2x128xf32> to vector<2x32xf32>
    %409 = arith.mulf %406, %397 : vector<2x32xf32>
    %410 = arith.mulf %405, %407 : vector<2x32xf32>
    %411 = arith.addf %409, %410 : vector<2x32xf32>
    %412 = math.tanh %411 : vector<2x32xf32>
    %413 = arith.mulf %408, %412 : vector<2x32xf32>
    %cst_56 = arith.constant dense<0.000000e+00> : vector<2x128xf32>
    %414 = tpu.matmul %413, %321, %cst_56 {dimension_numbers = #tpu.dot_dimension_numbers<[1], [0], [0], [1], [0, 0, 1, 1], [], []>} : vector<2x32xf32>, vector<32x128xf32>, vector<2x128xf32> -> vector<2x128xf32>
    %415 = arith.addf %342, %414 : vector<2x128xf32>
    %416 = math.tanh %415 : vector<2x128xf32>
    %417 = arith.mulf %416, %8 : vector<2x128xf32>
    %418 = arith.addf %417, %11 : vector<2x128xf32>
    %419 = vector.extract_strided_slice %418 {offsets = [0, 0], sizes = [2, 32], strides = [1, 1]} : vector<2x128xf32> to vector<2x32xf32>
    %420 = vector.extract_strided_slice %418 {offsets = [0, 32], sizes = [2, 32], strides = [1, 1]} : vector<2x128xf32> to vector<2x32xf32>
    %421 = vector.extract_strided_slice %418 {offsets = [0, 64], sizes = [2, 32], strides = [1, 1]} : vector<2x128xf32> to vector<2x32xf32>
    %422 = vector.extract_strided_slice %418 {offsets = [0, 96], sizes = [2, 32], strides = [1, 1]} : vector<2x128xf32> to vector<2x32xf32>
    %423 = arith.mulf %420, %411 : vector<2x32xf32>
    %424 = arith.mulf %419, %421 : vector<2x32xf32>
    %425 = arith.addf %423, %424 : vector<2x32xf32>
    %426 = math.tanh %425 : vector<2x32xf32>
    %427 = arith.mulf %422, %426 : vector<2x32xf32>
    %cst_57 = arith.constant dense<0.000000e+00> : vector<2x128xf32>
    %428 = tpu.matmul %427, %321, %cst_57 {dimension_numbers = #tpu.dot_dimension_numbers<[1], [0], [0], [1], [0, 0, 1, 1], [], []>} : vector<2x32xf32>, vector<32x128xf32>, vector<2x128xf32> -> vector<2x128xf32>
    %429 = arith.addf %343, %428 : vector<2x128xf32>
    %430 = math.tanh %429 : vector<2x128xf32>
    %431 = arith.mulf %430, %8 : vector<2x128xf32>
    %432 = arith.addf %431, %11 : vector<2x128xf32>
    %433 = vector.extract_strided_slice %432 {offsets = [0, 0], sizes = [2, 32], strides = [1, 1]} : vector<2x128xf32> to vector<2x32xf32>
    %434 = vector.extract_strided_slice %432 {offsets = [0, 32], sizes = [2, 32], strides = [1, 1]} : vector<2x128xf32> to vector<2x32xf32>
    %435 = vector.extract_strided_slice %432 {offsets = [0, 64], sizes = [2, 32], strides = [1, 1]} : vector<2x128xf32> to vector<2x32xf32>
    %436 = vector.extract_strided_slice %432 {offsets = [0, 96], sizes = [2, 32], strides = [1, 1]} : vector<2x128xf32> to vector<2x32xf32>
    %437 = arith.mulf %434, %425 : vector<2x32xf32>
    %438 = arith.mulf %433, %435 : vector<2x32xf32>
    %439 = arith.addf %437, %438 : vector<2x32xf32>
    %440 = math.tanh %439 : vector<2x32xf32>
    %441 = arith.mulf %436, %440 : vector<2x32xf32>
    %cst_58 = arith.constant dense<0.000000e+00> : vector<2x128xf32>
    %442 = tpu.matmul %441, %321, %cst_58 {dimension_numbers = #tpu.dot_dimension_numbers<[1], [0], [0], [1], [0, 0, 1, 1], [], []>} : vector<2x32xf32>, vector<32x128xf32>, vector<2x128xf32> -> vector<2x128xf32>
    %443 = arith.addf %344, %442 : vector<2x128xf32>
    %444 = math.tanh %443 : vector<2x128xf32>
    %445 = arith.mulf %444, %8 : vector<2x128xf32>
    %446 = arith.addf %445, %11 : vector<2x128xf32>
    %447 = vector.extract_strided_slice %446 {offsets = [0, 0], sizes = [2, 32], strides = [1, 1]} : vector<2x128xf32> to vector<2x32xf32>
    %448 = vector.extract_strided_slice %446 {offsets = [0, 32], sizes = [2, 32], strides = [1, 1]} : vector<2x128xf32> to vector<2x32xf32>
    %449 = vector.extract_strided_slice %446 {offsets = [0, 64], sizes = [2, 32], strides = [1, 1]} : vector<2x128xf32> to vector<2x32xf32>
    %450 = vector.extract_strided_slice %446 {offsets = [0, 96], sizes = [2, 32], strides = [1, 1]} : vector<2x128xf32> to vector<2x32xf32>
    %451 = arith.mulf %448, %439 : vector<2x32xf32>
    %452 = arith.mulf %447, %449 : vector<2x32xf32>
    %453 = arith.addf %451, %452 : vector<2x32xf32>
    %454 = math.tanh %453 : vector<2x32xf32>
    %455 = arith.mulf %450, %454 : vector<2x32xf32>
    %456 = tpu.concatenate %357, %371, %385, %399, %413, %427, %441, %455 in 0 : vector<2x32xf32>, vector<2x32xf32>, vector<2x32xf32>, vector<2x32xf32>, vector<2x32xf32>, vector<2x32xf32>, vector<2x32xf32>, vector<2x32xf32> -> vector<16x32xf32>
    %457 = tpu.concatenate %455, %441, %427, %413, %399, %385, %371, %357 in 0 : vector<2x32xf32>, vector<2x32xf32>, vector<2x32xf32>, vector<2x32xf32>, vector<2x32xf32>, vector<2x32xf32>, vector<2x32xf32>, vector<2x32xf32> -> vector<16x32xf32>
    %458 = vector.extract_strided_slice %456 {offsets = [0, 0], sizes = [16, 16], strides = [1, 1]} : vector<16x32xf32> to vector<16x16xf32>
    %459 = vector.extract_strided_slice %457 {offsets = [0, 16], sizes = [16, 16], strides = [1, 1]} : vector<16x32xf32> to vector<16x16xf32>
    %460 = tpu.concatenate %458, %459 in 1 : vector<16x16xf32>, vector<16x16xf32> -> vector<16x32xf32>
    %461 = vector.extract_strided_slice %460 {offsets = [0, 0], sizes = [1, 32], strides = [1, 1]} : vector<16x32xf32> to vector<1x32xf32>
    %462 = vector.extract_strided_slice %460 {offsets = [2, 0], sizes = [1, 32], strides = [1, 1]} : vector<16x32xf32> to vector<1x32xf32>
    %463 = vector.extract_strided_slice %460 {offsets = [4, 0], sizes = [1, 32], strides = [1, 1]} : vector<16x32xf32> to vector<1x32xf32>
    %464 = vector.extract_strided_slice %460 {offsets = [6, 0], sizes = [1, 32], strides = [1, 1]} : vector<16x32xf32> to vector<1x32xf32>
    %465 = vector.extract_strided_slice %460 {offsets = [8, 0], sizes = [1, 32], strides = [1, 1]} : vector<16x32xf32> to vector<1x32xf32>
    %466 = vector.extract_strided_slice %460 {offsets = [10, 0], sizes = [1, 32], strides = [1, 1]} : vector<16x32xf32> to vector<1x32xf32>
    %467 = vector.extract_strided_slice %460 {offsets = [12, 0], sizes = [1, 32], strides = [1, 1]} : vector<16x32xf32> to vector<1x32xf32>
    %468 = vector.extract_strided_slice %460 {offsets = [14, 0], sizes = [1, 32], strides = [1, 1]} : vector<16x32xf32> to vector<1x32xf32>
    %469 = vector.extract_strided_slice %460 {offsets = [1, 0], sizes = [1, 32], strides = [1, 1]} : vector<16x32xf32> to vector<1x32xf32>
    %470 = vector.extract_strided_slice %460 {offsets = [3, 0], sizes = [1, 32], strides = [1, 1]} : vector<16x32xf32> to vector<1x32xf32>
    %471 = vector.extract_strided_slice %460 {offsets = [5, 0], sizes = [1, 32], strides = [1, 1]} : vector<16x32xf32> to vector<1x32xf32>
    %472 = vector.extract_strided_slice %460 {offsets = [7, 0], sizes = [1, 32], strides = [1, 1]} : vector<16x32xf32> to vector<1x32xf32>
    %473 = vector.extract_strided_slice %460 {offsets = [9, 0], sizes = [1, 32], strides = [1, 1]} : vector<16x32xf32> to vector<1x32xf32>
    %474 = vector.extract_strided_slice %460 {offsets = [11, 0], sizes = [1, 32], strides = [1, 1]} : vector<16x32xf32> to vector<1x32xf32>
    %475 = vector.extract_strided_slice %460 {offsets = [13, 0], sizes = [1, 32], strides = [1, 1]} : vector<16x32xf32> to vector<1x32xf32>
    %476 = vector.extract_strided_slice %460 {offsets = [15, 0], sizes = [1, 32], strides = [1, 1]} : vector<16x32xf32> to vector<1x32xf32>
    %477 = tpu.concatenate %461, %462, %463, %464, %465, %466, %467, %468, %469, %470, %471, %472, %473, %474, %475, %476 in 0 : vector<1x32xf32>, vector<1x32xf32>, vector<1x32xf32>, vector<1x32xf32>, vector<1x32xf32>, vector<1x32xf32>, vector<1x32xf32>, vector<1x32xf32>, vector<1x32xf32>, vector<1x32xf32>, vector<1x32xf32>, vector<1x32xf32>, vector<1x32xf32>, vector<1x32xf32>, vector<1x32xf32>, vector<1x32xf32> -> vector<16x32xf32>
    %c0_59 = arith.constant 0 : index
    %c0_60 = arith.constant 0 : index
    %478 = vector.load %arg4[%c0_59, %c0_60] : memref<32x128xf32, #tpu.memory_space<vmem>>, vector<32x128xf32>
    %cst_61 = arith.constant dense<0.000000e+00> : vector<16x128xf32>
    %479 = tpu.matmul %477, %478, %cst_61 {dimension_numbers = #tpu.dot_dimension_numbers<[1], [0], [0], [1], [0, 0, 1, 1], [], []>} : vector<16x32xf32>, vector<32x128xf32>, vector<16x128xf32> -> vector<16x128xf32>
    %c0_62 = arith.constant 0 : index
    %c0_63 = arith.constant 0 : index
    %480 = vector.load %arg5[%c0_62, %c0_63] : memref<1x128xf32, #tpu.memory_space<vmem>>, vector<1x128xf32>
    %481 = vector.broadcast %480 : vector<1x128xf32> to vector<16x128xf32>
    %482 = arith.addf %479, %481 : vector<16x128xf32>
    %cst_64 = arith.constant 0.000000e+00 : f32
    %483 = vector.broadcast %cst_64 : f32 to vector<16x128xf32>
    %484 = arith.maximumf %482, %483 : vector<16x128xf32>
    %c0_65 = arith.constant 0 : index
    %c0_66 = arith.constant 0 : index
    %485 = vector.load %arg6[%c0_65, %c0_66] : memref<128x64xf32, #tpu.memory_space<vmem>>, vector<128x64xf32>
    %cst_67 = arith.constant dense<0.000000e+00> : vector<16x64xf32>
    %486 = tpu.matmul %484, %485, %cst_67 {dimension_numbers = #tpu.dot_dimension_numbers<[1], [0], [0], [1], [0, 0, 1, 1], [], []>} : vector<16x128xf32>, vector<128x64xf32>, vector<16x64xf32> -> vector<16x64xf32>
    %c0_68 = arith.constant 0 : index
    %c0_69 = arith.constant 0 : index
    %487 = vector.load %arg7[%c0_68, %c0_69] : memref<1x64xf32, #tpu.memory_space<vmem>>, vector<1x64xf32>
    %488 = vector.broadcast %487 : vector<1x64xf32> to vector<16x64xf32>
    %489 = arith.addf %486, %488 : vector<16x64xf32>
    %cst_70 = arith.constant 1.000000e+00 : f32
    %490 = vector.broadcast %cst_70 : f32 to vector<16x1xf32>
    %491 = vector.extract_strided_slice %489 {offsets = [0, 0], sizes = [16, 32], strides = [1, 1]} : vector<16x64xf32> to vector<16x32xf32>
    %492 = tpu.concatenate %491, %490 in 1 : vector<16x32xf32>, vector<16x1xf32> -> vector<16x33xf32>
    %493 = vector.extract_strided_slice %489 {offsets = [0, 32], sizes = [16, 32], strides = [1, 1]} : vector<16x64xf32> to vector<16x32xf32>
    %494 = tpu.concatenate %493, %490 in 1 : vector<16x32xf32>, vector<16x1xf32> -> vector<16x33xf32>
    %c0_71 = arith.constant 0 : index
    %c0_72 = arith.constant 0 : index
    %495 = vector.load %arg8[%c0_71, %c0_72] : memref<165x33xf32, #tpu.memory_space<vmem>>, vector<165x33xf32>
    %cst_73 = arith.constant dense<0.000000e+00> : vector<165x16xf32>
    %496 = tpu.matmul %495, %494, %cst_73 {dimension_numbers = #tpu.dot_dimension_numbers<[1], [1], [0], [0], [0, 0, 1, 0], [], []>} : vector<165x33xf32>, vector<16x33xf32>, vector<165x16xf32> -> vector<165x16xf32>
    %497 = vector.extract_strided_slice %496 {offsets = [0, 0], sizes = [33, 16], strides = [1, 1]} : vector<165x16xf32> to vector<33x16xf32>
    %cst_74 = arith.constant dense<0.000000e+00> : vector<16x16xf32>
    %498 = tpu.matmul %492, %497, %cst_74 {dimension_numbers = #tpu.dot_dimension_numbers<[1], [0], [0], [1], [0, 0, 1, 1], [], []>} : vector<16x33xf32>, vector<33x16xf32>, vector<16x16xf32> -> vector<16x16xf32>
    %499 = vector.extract_strided_slice %498 {offsets = [0, 0], sizes = [8, 8], strides = [1, 1]} : vector<16x16xf32> to vector<8x8xf32>
    %500 = vector.extract_strided_slice %498 {offsets = [8, 8], sizes = [8, 8], strides = [1, 1]} : vector<16x16xf32> to vector<8x8xf32>
    %501 = tpu.concatenate %499, %500 in 0 : vector<8x8xf32>, vector<8x8xf32> -> vector<16x8xf32>
    %502 = vector.extract_strided_slice %496 {offsets = [33, 0], sizes = [33, 16], strides = [1, 1]} : vector<165x16xf32> to vector<33x16xf32>
    %cst_75 = arith.constant dense<0.000000e+00> : vector<16x16xf32>
    %503 = tpu.matmul %492, %502, %cst_75 {dimension_numbers = #tpu.dot_dimension_numbers<[1], [0], [0], [1], [0, 0, 1, 1], [], []>} : vector<16x33xf32>, vector<33x16xf32>, vector<16x16xf32> -> vector<16x16xf32>
    %504 = vector.extract_strided_slice %503 {offsets = [0, 0], sizes = [8, 8], strides = [1, 1]} : vector<16x16xf32> to vector<8x8xf32>
    %505 = vector.extract_strided_slice %503 {offsets = [8, 8], sizes = [8, 8], strides = [1, 1]} : vector<16x16xf32> to vector<8x8xf32>
    %506 = tpu.concatenate %504, %505 in 0 : vector<8x8xf32>, vector<8x8xf32> -> vector<16x8xf32>
    %507 = vector.extract_strided_slice %496 {offsets = [66, 0], sizes = [33, 16], strides = [1, 1]} : vector<165x16xf32> to vector<33x16xf32>
    %cst_76 = arith.constant dense<0.000000e+00> : vector<16x16xf32>
    %508 = tpu.matmul %492, %507, %cst_76 {dimension_numbers = #tpu.dot_dimension_numbers<[1], [0], [0], [1], [0, 0, 1, 1], [], []>} : vector<16x33xf32>, vector<33x16xf32>, vector<16x16xf32> -> vector<16x16xf32>
    %509 = vector.extract_strided_slice %508 {offsets = [0, 0], sizes = [8, 8], strides = [1, 1]} : vector<16x16xf32> to vector<8x8xf32>
    %510 = vector.extract_strided_slice %508 {offsets = [8, 8], sizes = [8, 8], strides = [1, 1]} : vector<16x16xf32> to vector<8x8xf32>
    %511 = tpu.concatenate %509, %510 in 0 : vector<8x8xf32>, vector<8x8xf32> -> vector<16x8xf32>
    %512 = vector.extract_strided_slice %496 {offsets = [99, 0], sizes = [33, 16], strides = [1, 1]} : vector<165x16xf32> to vector<33x16xf32>
    %cst_77 = arith.constant dense<0.000000e+00> : vector<16x16xf32>
    %513 = tpu.matmul %492, %512, %cst_77 {dimension_numbers = #tpu.dot_dimension_numbers<[1], [0], [0], [1], [0, 0, 1, 1], [], []>} : vector<16x33xf32>, vector<33x16xf32>, vector<16x16xf32> -> vector<16x16xf32>
    %514 = vector.extract_strided_slice %513 {offsets = [0, 0], sizes = [8, 8], strides = [1, 1]} : vector<16x16xf32> to vector<8x8xf32>
    %515 = vector.extract_strided_slice %513 {offsets = [8, 8], sizes = [8, 8], strides = [1, 1]} : vector<16x16xf32> to vector<8x8xf32>
    %516 = tpu.concatenate %514, %515 in 0 : vector<8x8xf32>, vector<8x8xf32> -> vector<16x8xf32>
    %517 = vector.extract_strided_slice %496 {offsets = [132, 0], sizes = [33, 16], strides = [1, 1]} : vector<165x16xf32> to vector<33x16xf32>
    %cst_78 = arith.constant dense<0.000000e+00> : vector<16x16xf32>
    %518 = tpu.matmul %492, %517, %cst_78 {dimension_numbers = #tpu.dot_dimension_numbers<[1], [0], [0], [1], [0, 0, 1, 1], [], []>} : vector<16x33xf32>, vector<33x16xf32>, vector<16x16xf32> -> vector<16x16xf32>
    %519 = vector.extract_strided_slice %518 {offsets = [0, 0], sizes = [8, 8], strides = [1, 1]} : vector<16x16xf32> to vector<8x8xf32>
    %520 = vector.extract_strided_slice %518 {offsets = [8, 8], sizes = [8, 8], strides = [1, 1]} : vector<16x16xf32> to vector<8x8xf32>
    %521 = tpu.concatenate %519, %520 in 0 : vector<8x8xf32>, vector<8x8xf32> -> vector<16x8xf32>
    %522 = tpu.concatenate %501, %506, %511, %516, %521 in 1 : vector<16x8xf32>, vector<16x8xf32>, vector<16x8xf32>, vector<16x8xf32>, vector<16x8xf32> -> vector<16x40xf32>
    %c0_79 = arith.constant 0 : index
    %c0_80 = arith.constant 0 : index
    %523 = vector.load %arg9[%c0_79, %c0_80] : memref<16x40xf32, #tpu.memory_space<vmem>>, vector<16x40xf32>
    tpu.vector_store %arg9[%c0_79, %c0_80], %522 {strides = array<i32>} : memref<16x40xf32, #tpu.memory_space<vmem>>, vector<16x40xf32>,
    return
  }
}

</mosaic_0001>

<llo_original>
// kernel: vimq_forward.1
$region0: #{vimq_forward.1}
  #allocation0 [shape = 'u32[]', space=smem, size = 0x4, offset = 0x4, fixed_abs, tag = 'smem constant byte address 0x4 - core index']
  #allocation1 [shape = 'u32[72,128]{1,0:T(1,128)}', space=vmem, size = 0x9000, scoped, tag = 'internal scratch']
  %s0 = inlined_call_operand.vmem [shape: f32[16,32], index: 0, kind: input, shape index: {}]
  %s1 = inlined_call_operand.vmem [shape: f32[3,32,128], index: 1, kind: input, shape index: {}]
  %s2 = inlined_call_operand.vmem [shape: f32[3,32,128], index: 2, kind: input, shape index: {}]
  %s3 = inlined_call_operand.vmem [shape: f32[3,1,128], index: 3, kind: input, shape index: {}]
  %s4 = inlined_call_operand.vmem [shape: f32[32,128], index: 4, kind: input, shape index: {}]
  %s5 = inlined_call_operand.vmem [shape: f32[1,128], index: 5, kind: input, shape index: {}]
  %s6 = inlined_call_operand.vmem [shape: f32[128,64], index: 6, kind: input, shape index: {}]
  %s7 = inlined_call_operand.vmem [shape: f32[1,64], index: 7, kind: input, shape index: {}]
  %s8 = inlined_call_operand.vmem [shape: f32[165,33], index: 8, kind: input, shape index: {}]
  %s9 = inlined_call_operand.vmem [shape: f32[16,40], index: 9, kind: output, shape index: {}]
  %s10 = sld [smem:[#allocation0]]
  $region46: #{vimq_forward.1} parent=0
    _
  %s12 = ssub.s32 1, %s10
  %s13 = scalar_select 0, %s12, %s10
  // Predicated region
  $region2: #{vimq_forward.1} parent=0 // pred_check
    _
  $region3: #{vimq_forward.1} parent=0 // pred_check_branch
    %15 = sbr.rel (0) target = $region5
  $region4: #{vimq_forward.1} parent=0 // pred_region
    _
  $region5: #{vimq_forward.1} parent=0 // pred_fallthru
    _
  // Predicated region
  $region6: #{vimq_forward.1} parent=0 // pred_check
    _
  $region7: #{vimq_forward.1} parent=0 // pred_check_branch
    %17 = sbr.rel (0) target = $region9
  $region8: #{vimq_forward.1} parent=0 // pred_region
    _
  $region9: #{vimq_forward.1} parent=0 // pred_fallthru
    _
  // Predicated region
  $region10: #{vimq_forward.1} parent=0 // pred_check
    _
  $region11: #{vimq_forward.1} parent=0 // pred_check_branch
    %19 = sbr.rel (0) target = $region13
  $region12: #{vimq_forward.1} parent=0 // pred_region
    _
  $region13: #{vimq_forward.1} parent=0 // pred_fallthru
    _
  // Predicated region
  $region14: #{vimq_forward.1} parent=0 // pred_check
    _
  $region15: #{vimq_forward.1} parent=0 // pred_check_branch
    %21 = sbr.rel (0) target = $region17
  $region16: #{vimq_forward.1} parent=0 // pred_region
    _
  $region17: #{vimq_forward.1} parent=0 // pred_fallthru
    _
  // Predicated region
  $region18: #{vimq_forward.1} parent=0 // pred_check
    _
  $region19: #{vimq_forward.1} parent=0 // pred_check_branch
    %23 = sbr.rel (0) target = $region21
  $region20: #{vimq_forward.1} parent=0 // pred_region
    _
  $region21: #{vimq_forward.1} parent=0 // pred_fallthru
    _
  // Predicated region
  $region22: #{vimq_forward.1} parent=0 // pred_check
    _
  $region23: #{vimq_forward.1} parent=0 // pred_check_branch
    %25 = sbr.rel (0) target = $region25
  $region24: #{vimq_forward.1} parent=0 // pred_region
    _
  $region25: #{vimq_forward.1} parent=0 // pred_fallthru
    _
  // Predicated region
  $region26: #{vimq_forward.1} parent=0 // pred_check
    _
  $region27: #{vimq_forward.1} parent=0 // pred_check_branch
    %27 = sbr.rel (0) target = $region29
  $region28: #{vimq_forward.1} parent=0 // pred_region
    _
  $region29: #{vimq_forward.1} parent=0 // pred_fallthru
    _
  // Predicated region
  $region30: #{vimq_forward.1} parent=0 // pred_check
    _
  $region31: #{vimq_forward.1} parent=0 // pred_check_branch
    %29 = sbr.rel (0) target = $region33
  $region32: #{vimq_forward.1} parent=0 // pred_region
    _
  $region33: #{vimq_forward.1} parent=0 // pred_fallthru
    _
  // Predicated region
  $region34: #{vimq_forward.1} parent=0 // pred_check
    _
  $region35: #{vimq_forward.1} parent=0 // pred_check_branch
    %31 = sbr.rel (0) target = $region37
  $region36: #{vimq_forward.1} parent=0 // pred_region
    _
  $region37: #{vimq_forward.1} parent=0 // pred_fallthru
    _
  %v32 = vlaneseq
  %v33 = vand.u32 %v32, 127
  %vm34 = vcmp.ge.s32.totalorder %v33, 64
  %vm35 = vcmp.lt.s32.totalorder %v33, 96
  %vm36 = vmand %vm34, %vm35
  %v37 = vsel %vm36, 1.0, 0.5
  %v38 = vsel %vm36, 0.0, 0.5
  %vm39 = vcmp.lt.s32.totalorder %v33, 0
  %v40 = vsub.s32 0, %v33
  %v41 = vsel %vm39, %v40, %v33
  %v42 = vshrl.u32 %v41, 5
  %v43 = vand.u32 %v41, 31
  %v44 = vsub.s32 0, %v43
  %v45 = vsel %vm39, %v44, %v43
  %vm46 = vcmp.ne.s32.totalorder %v45, 0
  %vm47 = vcmp.lt.s32.totalorder %v45, 0
  %vm48 = vmand %vm47, %vm46
  %v49 = vadd.s32 %v45, 32
  %v50 = vsel %vm48, %v49, %v45
  %vm51 = vcmp.lt.s32.totalorder %v50, 16
  %v52 = vld [vmem:[%s0] sm:$0xff]
  %v53 = vld [vmem:[%s0 + $0x8] sm:$0xff]
  %v54 = vld [vmem:[%s1] sm:$0xff]
  %v55 = vld [vmem:[%s1 + $0x8] sm:$0xff]
  %v56 = vld [vmem:[%s1 + $0x10] sm:$0xff]
  %v57 = vld [vmem:[%s1 + $0x18] sm:$0xff]
  %v58 = vld [vmem:[%s2] sm:$0xff]
  %v59 = vld [vmem:[%s2 + $0x8] sm:$0xff]
  %v60 = vld [vmem:[%s2 + $0x10] sm:$0xff]
  %v61 = vld [vmem:[%s2 + $0x18] sm:$0xff]
  %v62 = vld [vmem:[%s3] sm:$0x1]
  %v64 = vperm.slane %v62, 0
  %vm66 = vcmask 261120
  %v68 = vsel %vm66, %v52, 0
  %v71 = vsel %vm66, %v53, 0
  %73 = vmatpush.msra.mxu0 0.0
  %74 = vmatpush.msra.mxu0 0.0
  %75 = vmatpush.msra.mxu0 0.0
  %76 = vmatpush.msra.mxu0 0.0
  %77 = vmatpush.msra.mxu0 0.0
  %78 = vmatpush.msra.mxu0 0.0
  %79 = vmatpush.msra.mxu0 0.0
  %80 = vmatpush.msra.mxu0 0.0
  %81 = vmatpush.msra.mxu0 0.0
  %82 = vmatpush.msra.mxu0 0.0
  %83 = vmatpush.msra.mxu0 0.0
  %84 = vmatpush.msra.mxu0 0.0
  %85 = vmatpush.msra.mxu0 %v57
  %86 = vmatpush.msra.mxu0 %v56
  %87 = vmatpush.msra.mxu0 %v55
  %88 = vmatpush.msra.mxu0 %v54
  %89 = vmatmul.f32.gmra.mxu0 %v68
  %v90 = vpop.f32.mrf.mxu0
  %v91 = vadd.f32 %v64, %v90
  %92 = vmatmul.f32.gmra.mxu0 %v71
  %v93 = vpop.f32.mrf.mxu0
  %v94 = vadd.f32 %v64, %v93
  %95 = vdwg.mxu0
  %v97 = vrot.slane %v94, 6
  %v99 = vrot.slane %v94, 2
  %v102 = vrot.slane %v91, 6
  %v104 = vrot.slane %v91, 2
  %vm106 = vcmask 1041408
  %v107 = vsel %vm106, %v97, %v99
  %vm108 = vcmask 1043456
  %v109 = vsel %vm108, %v107, %v97
  %vm110 = vcmask 1045504
  %v111 = vsel %vm110, %v109, %v99
  %v112 = vsel %vm106, %v102, %v104
  %v113 = vsel %vm108, %v112, %v102
  %v114 = vsel %vm110, %v113, %v104
  %v115 = vsel %vm51, %v91, %v111
  %v116 = vsel %vm51, %v94, %v114
  %v117 = vtanh.pop %v115
  %v118 = vmul.f32 %v117, %v37
  %v119 = vadd.f32 %v118, %v38
  %v120 = vmul.f32 %v119, 0.0
  %122 = vrot.lane.b32.xlu0 %v119, 64
  %v123 = vpop.permute.xlu0 %122
  %v125 = vmul.f32 %v119, %v123
  %127 = vrot.lane.b32.xlu0 %v125, 32
  %v128 = vpop.permute.xlu0 %127
  %v130 = vadd.f32 %v120, %v128
  %v131 = vtanh.pop %v130
  %133 = vrot.lane.b32.xlu0 %v131, 64
  %v134 = vpop.permute.xlu0 %133
  %v136 = vmul.f32 %v119, %v134
  %138 = vrot.lane.b32.xlu0 %v136, 32
  %v139 = vpop.permute.xlu0 %138
  %v140 = vsel %vm66, %v139, 0
  %142 = vmatpush.msra.mxu0 0.0
  %143 = vmatpush.msra.mxu0 0.0
  %144 = vmatpush.msra.mxu0 0.0
  %145 = vmatpush.msra.mxu0 0.0
  %146 = vmatpush.msra.mxu0 0.0
  %147 = vmatpush.msra.mxu0 0.0
  %148 = vmatpush.msra.mxu0 0.0
  %149 = vmatpush.msra.mxu0 0.0
  %150 = vmatpush.msra.mxu0 0.0
  %151 = vmatpush.msra.mxu0 0.0
  %152 = vmatpush.msra.mxu0 0.0
  %153 = vmatpush.msra.mxu0 0.0
  %154 = vmatpush.msra.mxu0 %v61
  %155 = vmatpush.msra.mxu0 %v60
  %156 = vmatpush.msra.mxu0 %v59
  %157 = vmatpush.msra.mxu0 %v58
  %158 = vmatmul.f32.gmra.mxu0 %v140
  %v159 = vpop.f32.mrf.mxu0
  %v160 = vadd.f32 0.0, %v159
  %161 = vdwg.mxu0
  %v163 = vrot.slane %v160, 6
  %v165 = vadd.f32 %v115, %v163
  %v166 = vtanh.pop %v165
  %v167 = vmul.f32 %v166, %v37
  %v168 = vadd.f32 %v167, %v38
  %v170 = vrot.slane %v130, 6
  %v172 = vmul.f32 %v168, %v170
  %174 = vrot.lane.b32.xlu0 %v168, 64
  %v175 = vpop.permute.xlu0 %174
  %v177 = vmul.f32 %v168, %v175
  %179 = vrot.lane.b32.xlu0 %v177, 32
  %v180 = vpop.permute.xlu0 %179
  %v182 = vadd.f32 %v172, %v180
  %v183 = vtanh.pop %v182
  %185 = vrot.lane.b32.xlu0 %v183, 64
  %v186 = vpop.permute.xlu0 %185
  %v188 = vmul.f32 %v168, %v186
  %v190 = vrot.slane %v188, 2
  %191 = vrot.lane.b32.xlu0 %v190, 32
  %v192 = vpop.permute.xlu0 %191
  %v193 = vsel %vm66, %v192, 0
  %195 = vmatpush.msra.mxu0 0.0
  %196 = vmatpush.msra.mxu0 0.0
  %197 = vmatpush.msra.mxu0 0.0
  %198 = vmatpush.msra.mxu0 0.0
  %199 = vmatpush.msra.mxu0 0.0
  %200 = vmatpush.msra.mxu0 0.0
  %201 = vmatpush.msra.mxu0 0.0
  %202 = vmatpush.msra.mxu0 0.0
  %203 = vmatpush.msra.mxu0 0.0
  %204 = vmatpush.msra.mxu0 0.0
  %205 = vmatpush.msra.mxu0 0.0
  %206 = vmatpush.msra.mxu0 0.0
  %207 = vmatpush.msra.mxu0 %v61
  %208 = vmatpush.msra.mxu0 %v60
  %209 = vmatpush.msra.mxu0 %v59
  %210 = vmatpush.msra.mxu0 %v58
  %211 = vmatmul.f32.gmra.mxu0 %v193
  %v212 = vpop.f32.mrf.mxu0
  %v213 = vadd.f32 0.0, %v212
  %214 = vdwg.mxu0
  %v216 = vrot.slane %v213, 4
  %v218 = vadd.f32 %v115, %v216
  %v219 = vtanh.pop %v218
  %v220 = vmul.f32 %v219, %v37
  %v221 = vadd.f32 %v220, %v38
  %v223 = vrot.slane %v182, 6
  %v225 = vmul.f32 %v221, %v223
  %227 = vrot.lane.b32.xlu0 %v221, 64
  %v228 = vpop.permute.xlu0 %227
  %v230 = vmul.f32 %v221, %v228
  %232 = vrot.lane.b32.xlu0 %v230, 32
  %v233 = vpop.permute.xlu0 %232
  %v235 = vadd.f32 %v225, %v233
  %v236 = vtanh.pop %v235
  %238 = vrot.lane.b32.xlu0 %v236, 64
  %v239 = vpop.permute.xlu0 %238
  %v241 = vmul.f32 %v221, %v239
  %v243 = vrot.slane %v241, 4
  %244 = vrot.lane.b32.xlu0 %v243, 32
  %v245 = vpop.permute.xlu0 %244
  %v246 = vsel %vm66, %v245, 0
  %248 = vmatpush.msra.mxu0 0.0
  %249 = vmatpush.msra.mxu0 0.0
  %250 = vmatpush.msra.mxu0 0.0
  %251 = vmatpush.msra.mxu0 0.0
  %252 = vmatpush.msra.mxu0 0.0
  %253 = vmatpush.msra.mxu0 0.0
  %254 = vmatpush.msra.mxu0 0.0
  %255 = vmatpush.msra.mxu0 0.0
  %256 = vmatpush.msra.mxu0 0.0
  %257 = vmatpush.msra.mxu0 0.0
  %258 = vmatpush.msra.mxu0 0.0
  %259 = vmatpush.msra.mxu0 0.0
  %260 = vmatpush.msra.mxu0 %v61
  %261 = vmatpush.msra.mxu0 %v60
  %262 = vmatpush.msra.mxu0 %v59
  %263 = vmatpush.msra.mxu0 %v58
  %264 = vmatmul.f32.gmra.mxu0 %v246
  %v265 = vpop.f32.mrf.mxu0
  %v266 = vadd.f32 0.0, %v265
  %267 = vdwg.mxu0
  %v269 = vrot.slane %v266, 2
  %v271 = vadd.f32 %v115, %v269
  %v272 = vtanh.pop %v271
  %v273 = vmul.f32 %v272, %v37
  %v274 = vadd.f32 %v273, %v38
  %v276 = vrot.slane %v235, 6
  %v278 = vmul.f32 %v274, %v276
  %280 = vrot.lane.b32.xlu0 %v274, 64
  %v281 = vpop.permute.xlu0 %280
  %v283 = vmul.f32 %v274, %v281
  %285 = vrot.lane.b32.xlu0 %v283, 32
  %v286 = vpop.permute.xlu0 %285
  %v288 = vadd.f32 %v278, %v286
  %v289 = vtanh.pop %v288
  %291 = vrot.lane.b32.xlu0 %v289, 64
  %v292 = vpop.permute.xlu0 %291
  %v294 = vmul.f32 %v274, %v292
  %v296 = vrot.slane %v294, 6
  %297 = vrot.lane.b32.xlu0 %v296, 32
  %v298 = vpop.permute.xlu0 %297
  %v299 = vsel %vm66, %v298, 0
  %301 = vmatpush.msra.mxu0 0.0
  %302 = vmatpush.msra.mxu0 0.0
  %303 = vmatpush.msra.mxu0 0.0
  %304 = vmatpush.msra.mxu0 0.0
  %305 = vmatpush.msra.mxu0 0.0
  %306 = vmatpush.msra.mxu0 0.0
  %307 = vmatpush.msra.mxu0 0.0
  %308 = vmatpush.msra.mxu0 0.0
  %309 = vmatpush.msra.mxu0 0.0
  %310 = vmatpush.msra.mxu0 0.0
  %311 = vmatpush.msra.mxu0 0.0
  %312 = vmatpush.msra.mxu0 0.0
  %313 = vmatpush.msra.mxu0 %v61
  %314 = vmatpush.msra.mxu0 %v60
  %315 = vmatpush.msra.mxu0 %v59
  %316 = vmatpush.msra.mxu0 %v58
  %317 = vmatmul.f32.gmra.mxu0 %v299
  %v318 = vpop.f32.mrf.mxu0
  %v319 = vadd.f32 0.0, %v318
  %320 = vdwg.mxu0
  %v321 = vadd.f32 %v116, %v319
  %v322 = vtanh.pop %v321
  %v323 = vmul.f32 %v322, %v37
  %v324 = vadd.f32 %v323, %v38
  %v326 = vrot.slane %v288, 6
  %v328 = vmul.f32 %v324, %v326
  %330 = vrot.lane.b32.xlu0 %v324, 64
  %v331 = vpop.permute.xlu0 %330
  %v333 = vmul.f32 %v324, %v331
  %335 = vrot.lane.b32.xlu0 %v333, 32
  %v336 = vpop.permute.xlu0 %335
  %v338 = vadd.f32 %v328, %v336
  %v339 = vtanh.pop %v338
  %341 = vrot.lane.b32.xlu0 %v339, 64
  %v342 = vpop.permute.xlu0 %341
  %v344 = vmul.f32 %v324, %v342
  %346 = vrot.lane.b32.xlu0 %v344, 32
  %v347 = vpop.permute.xlu0 %346
  %v348 = vsel %vm66, %v347, 0
  %350 = vmatpush.msra.mxu0 0.0
  %351 = vmatpush.msra.mxu0 0.0
  %352 = vmatpush.msra.mxu0 0.0
  %353 = vmatpush.msra.mxu0 0.0
  %354 = vmatpush.msra.mxu0 0.0
  %355 = vmatpush.msra.mxu0 0.0
  %356 = vmatpush.msra.mxu0 0.0
  %357 = vmatpush.msra.mxu0 0.0
  %358 = vmatpush.msra.mxu0 0.0
  %359 = vmatpush.msra.mxu0 0.0
  %360 = vmatpush.msra.mxu0 0.0
  %361 = vmatpush.msra.mxu0 0.0
  %362 = vmatpush.msra.mxu0 %v61
  %363 = vmatpush.msra.mxu0 %v60
  %364 = vmatpush.msra.mxu0 %v59
  %365 = vmatpush.msra.mxu0 %v58
  %366 = vmatmul.f32.gmra.mxu0 %v348
  %v367 = vpop.f32.mrf.mxu0
  %v368 = vadd.f32 0.0, %v367
  %369 = vdwg.mxu0
  %v371 = vrot.slane %v368, 6
  %v373 = vadd.f32 %v116, %v371
  %v374 = vtanh.pop %v373
  %v375 = vmul.f32 %v374, %v37
  %v376 = vadd.f32 %v375, %v38
  %v378 = vrot.slane %v338, 6
  %v380 = vmul.f32 %v376, %v378
  %382 = vrot.lane.b32.xlu0 %v376, 64
  %v383 = vpop.permute.xlu0 %382
  %v385 = vmul.f32 %v376, %v383
  %387 = vrot.lane.b32.xlu0 %v385, 32
  %v388 = vpop.permute.xlu0 %387
  %v390 = vadd.f32 %v380, %v388
  %v391 = vtanh.pop %v390
  %393 = vrot.lane.b32.xlu0 %v391, 64
  %v394 = vpop.permute.xlu0 %393
  %v396 = vmul.f32 %v376, %v394
  %v398 = vrot.slane %v396, 2
  %399 = vrot.lane.b32.xlu0 %v398, 32
  %v400 = vpop.permute.xlu0 %399
  %v401 = vsel %vm66, %v400, 0
  %403 = vmatpush.msra.mxu0 0.0
  %404 = vmatpush.msra.mxu0 0.0
  %405 = vmatpush.msra.mxu0 0.0
  %406 = vmatpush.msra.mxu0 0.0
  %407 = vmatpush.msra.mxu0 0.0
  %408 = vmatpush.msra.mxu0 0.0
  %409 = vmatpush.msra.mxu0 0.0
  %410 = vmatpush.msra.mxu0 0.0
  %411 = vmatpush.msra.mxu0 0.0
  %412 = vmatpush.msra.mxu0 0.0
  %413 = vmatpush.msra.mxu0 0.0
  %414 = vmatpush.msra.mxu0 0.0
  %415 = vmatpush.msra.mxu0 %v61
  %416 = vmatpush.msra.mxu0 %v60
  %417 = vmatpush.msra.mxu0 %v59
  %418 = vmatpush.msra.mxu0 %v58
  %419 = vmatmul.f32.gmra.mxu0 %v401
  %v420 = vpop.f32.mrf.mxu0
  %v421 = vadd.f32 0.0, %v420
  %422 = vdwg.mxu0
  %v424 = vrot.slane %v421, 4
  %v426 = vadd.f32 %v116, %v424
  %v427 = vtanh.pop %v426
  %v428 = vmul.f32 %v427, %v37
  %v429 = vadd.f32 %v428, %v38
  %v431 = vrot.slane %v390, 6
  %v433 = vmul.f32 %v429, %v431
  %435 = vrot.lane.b32.xlu0 %v429, 64
  %v436 = vpop.permute.xlu0 %435
  %v438 = vmul.f32 %v429, %v436
  %440 = vrot.lane.b32.xlu0 %v438, 32
  %v441 = vpop.permute.xlu0 %440
  %v443 = vadd.f32 %v433, %v441
  %v444 = vtanh.pop %v443
  %446 = vrot.lane.b32.xlu0 %v444, 64
  %v447 = vpop.permute.xlu0 %446
  %v449 = vmul.f32 %v429, %v447
  %v451 = vrot.slane %v449, 4
  %452 = vrot.lane.b32.xlu0 %v451, 32
  %v453 = vpop.permute.xlu0 %452
  %v454 = vsel %vm66, %v453, 0
  %456 = vmatpush.msra.mxu0 0.0
  %457 = vmatpush.msra.mxu0 0.0
  %458 = vmatpush.msra.mxu0 0.0
  %459 = vmatpush.msra.mxu0 0.0
  %460 = vmatpush.msra.mxu0 0.0
  %461 = vmatpush.msra.mxu0 0.0
  %462 = vmatpush.msra.mxu0 0.0
  %463 = vmatpush.msra.mxu0 0.0
  %464 = vmatpush.msra.mxu0 0.0
  %465 = vmatpush.msra.mxu0 0.0
  %466 = vmatpush.msra.mxu0 0.0
  %467 = vmatpush.msra.mxu0 0.0
  %468 = vmatpush.msra.mxu0 %v61
  %469 = vmatpush.msra.mxu0 %v60
  %470 = vmatpush.msra.mxu0 %v59
  %471 = vmatpush.msra.mxu0 %v58
  %472 = vmatmul.f32.gmra.mxu0 %v454
  %v473 = vpop.f32.mrf.mxu0
  %v474 = vadd.f32 0.0, %v473
  %475 = vdwg.mxu0
  %v477 = vrot.slane %v474, 2
  %v479 = vadd.f32 %v116, %v477
  %v480 = vtanh.pop %v479
  %v481 = vmul.f32 %v480, %v37
  %v482 = vadd.f32 %v481, %v38
  %v484 = vrot.slane %v443, 6
  %v486 = vmul.f32 %v482, %v484
  %488 = vrot.lane.b32.xlu0 %v482, 64
  %v489 = vpop.permute.xlu0 %488
  %v491 = vmul.f32 %v482, %v489
  %493 = vrot.lane.b32.xlu0 %v491, 32
  %v494 = vpop.permute.xlu0 %493
  %v496 = vadd.f32 %v486, %v494
  %v497 = vtanh.pop %v496
  %499 = vrot.lane.b32.xlu0 %v497, 64
  %v500 = vpop.permute.xlu0 %499
  %v502 = vmul.f32 %v482, %v500
  %v503 = vsel %vm106, %v136, %v188
  %v504 = vsel %vm108, %v503, %v241
  %v505 = vsel %vm110, %v504, %v294
  %v506 = vsel %vm106, %v344, %v396
  %v507 = vsel %vm108, %v506, %v449
  %v508 = vsel %vm110, %v507, %v502
  %v510 = vrot.slane %v502, 6
  %v512 = vrot.slane %v449, 2
  %v514 = vrot.slane %v396, 6
  %v516 = vrot.slane %v344, 2
  %v519 = vrot.slane %v241, 2
  %v521 = vrot.slane %v188, 6
  %v523 = vrot.slane %v136, 2
  %v525 = vsel %vm106, %v510, %v512
  %v526 = vsel %vm108, %v525, %v514
  %v527 = vsel %vm110, %v526, %v516
  %v528 = vsel %vm106, %v296, %v519
  %v529 = vsel %vm108, %v528, %v521
  %v530 = vsel %vm110, %v529, %v523
  %533 = vrot.lane.b32.xlu0 %v505, 32
  %v534 = vpop.permute.xlu0 %533
  %535 = vrot.lane.b32.xlu0 %v508, 32
  %v536 = vpop.permute.xlu0 %535
  %541 = vrot.lane.b32.xlu0 %v527, 32
  %v542 = vpop.permute.xlu0 %541
  %543 = vrot.lane.b32.xlu0 %v530, 32
  %v544 = vpop.permute.xlu0 %543
  %vm547 = vcmask 130048
  %v548 = vsel %vm547, %v534, %v542
  %v549 = vsel %vm547, %v536, %v544
  %s550 = scalar_lea.vmem %s1, 32
  %v551 = vld [vmem:[%s550] sm:$0xff]
  %v552 = vld [vmem:[%s550 + $0x8] sm:$0xff]
  %v553 = vld [vmem:[%s550 + $0x10] sm:$0xff]
  %v554 = vld [vmem:[%s550 + $0x18] sm:$0xff]
  %s555 = scalar_lea.vmem %s2, 32
  %v556 = vld [vmem:[%s555] sm:$0xff]
  %v557 = vld [vmem:[%s555 + $0x8] sm:$0xff]
  %v558 = vld [vmem:[%s555 + $0x10] sm:$0xff]
  %v559 = vld [vmem:[%s555 + $0x18] sm:$0xff]
  %s560 = scalar_lea.vmem %s3, 1
  %v561 = vld [vmem:[%s560] sm:$0x1]
  %v563 = vperm.slane %v561, 0
  %v566 = vsel %vm66, %v548, 0
  %v569 = vsel %vm66, %v549, 0
  %571 = vmatpush.msra.mxu0 0.0
  %572 = vmatpush.msra.mxu0 0.0
  %573 = vmatpush.msra.mxu0 0.0
  %574 = vmatpush.msra.mxu0 0.0
  %575 = vmatpush.msra.mxu0 0.0
  %576 = vmatpush.msra.mxu0 0.0
  %577 = vmatpush.msra.mxu0 0.0
  %578 = vmatpush.msra.mxu0 0.0
  %579 = vmatpush.msra.mxu0 0.0
  %580 = vmatpush.msra.mxu0 0.0
  %581 = vmatpush.msra.mxu0 0.0
  %582 = vmatpush.msra.mxu0 0.0
  %583 = vmatpush.msra.mxu0 %v554
  %584 = vmatpush.msra.mxu0 %v553
  %585 = vmatpush.msra.mxu0 %v552
  %586 = vmatpush.msra.mxu0 %v551
  %587 = vmatmul.f32.gmra.mxu0 %v566
  %v588 = vpop.f32.mrf.mxu0
  %v589 = vadd.f32 %v563, %v588
  %590 = vmatmul.f32.gmra.mxu0 %v569
  %v591 = vpop.f32.mrf.mxu0
  %v592 = vadd.f32 %v563, %v591
  %593 = vdwg.mxu0
  %v595 = vrot.slane %v592, 6
  %v597 = vrot.slane %v592, 2
  %v600 = vrot.slane %v589, 6
  %v602 = vrot.slane %v589, 2
  %v604 = vsel %vm106, %v595, %v597
  %v605 = vsel %vm108, %v604, %v595
  %v606 = vsel %vm110, %v605, %v597
  %v607 = vsel %vm106, %v600, %v602
  %v608 = vsel %vm108, %v607, %v600
  %v609 = vsel %vm110, %v608, %v602
  %v610 = vsel %vm51, %v589, %v606
  %v611 = vsel %vm51, %v592, %v609
  %v612 = vtanh.pop %v610
  %v613 = vmul.f32 %v612, %v37
  %v614 = vadd.f32 %v613, %v38
  %v615 = vmul.f32 %v614, 0.0
  %617 = vrot.lane.b32.xlu0 %v614, 64
  %v618 = vpop.permute.xlu0 %617
  %v620 = vmul.f32 %v614, %v618
  %622 = vrot.lane.b32.xlu0 %v620, 32
  %v623 = vpop.permute.xlu0 %622
  %v625 = vadd.f32 %v615, %v623
  %v626 = vtanh.pop %v625
  %628 = vrot.lane.b32.xlu0 %v626, 64
  %v629 = vpop.permute.xlu0 %628
  %v631 = vmul.f32 %v614, %v629
  %633 = vrot.lane.b32.xlu0 %v631, 32
  %v634 = vpop.permute.xlu0 %633
  %v635 = vsel %vm66, %v634, 0
  %637 = vmatpush.msra.mxu0 0.0
  %638 = vmatpush.msra.mxu0 0.0
  %639 = vmatpush.msra.mxu0 0.0
  %640 = vmatpush.msra.mxu0 0.0
  %641 = vmatpush.msra.mxu0 0.0
  %642 = vmatpush.msra.mxu0 0.0
  %643 = vmatpush.msra.mxu0 0.0
  %644 = vmatpush.msra.mxu0 0.0
  %645 = vmatpush.msra.mxu0 0.0
  %646 = vmatpush.msra.mxu0 0.0
  %647 = vmatpush.msra.mxu0 0.0
  %648 = vmatpush.msra.mxu0 0.0
  %649 = vmatpush.msra.mxu0 %v559
  %650 = vmatpush.msra.mxu0 %v558
  %651 = vmatpush.msra.mxu0 %v557
  %652 = vmatpush.msra.mxu0 %v556
  %653 = vmatmul.f32.gmra.mxu0 %v635
  %v654 = vpop.f32.mrf.mxu0
  %v655 = vadd.f32 0.0, %v654
  %656 = vdwg.mxu0
  %v658 = vrot.slane %v655, 6
  %v660 = vadd.f32 %v610, %v658
  %v661 = vtanh.pop %v660
  %v662 = vmul.f32 %v661, %v37
  %v663 = vadd.f32 %v662, %v38
  %v665 = vrot.slane %v625, 6
  %v667 = vmul.f32 %v663, %v665
  %669 = vrot.lane.b32.xlu0 %v663, 64
  %v670 = vpop.permute.xlu0 %669
  %v672 = vmul.f32 %v663, %v670
  %674 = vrot.lane.b32.xlu0 %v672, 32
  %v675 = vpop.permute.xlu0 %674
  %v677 = vadd.f32 %v667, %v675
  %v678 = vtanh.pop %v677
  %680 = vrot.lane.b32.xlu0 %v678, 64
  %v681 = vpop.permute.xlu0 %680
  %v683 = vmul.f32 %v663, %v681
  %v685 = vrot.slane %v683, 2
  %686 = vrot.lane.b32.xlu0 %v685, 32
  %v687 = vpop.permute.xlu0 %686
  %v688 = vsel %vm66, %v687, 0
  %690 = vmatpush.msra.mxu0 0.0
  %691 = vmatpush.msra.mxu0 0.0
  %692 = vmatpush.msra.mxu0 0.0
  %693 = vmatpush.msra.mxu0 0.0
  %694 = vmatpush.msra.mxu0 0.0
  %695 = vmatpush.msra.mxu0 0.0
  %696 = vmatpush.msra.mxu0 0.0
  %697 = vmatpush.msra.mxu0 0.0
  %698 = vmatpush.msra.mxu0 0.0
  %699 = vmatpush.msra.mxu0 0.0
  %700 = vmatpush.msra.mxu0 0.0
  %701 = vmatpush.msra.mxu0 0.0
  %702 = vmatpush.msra.mxu0 %v559
  %703 = vmatpush.msra.mxu0 %v558
  %704 = vmatpush.msra.mxu0 %v557
  %705 = vmatpush.msra.mxu0 %v556
  %706 = vmatmul.f32.gmra.mxu0 %v688
  %v707 = vpop.f32.mrf.mxu0
  %v708 = vadd.f32 0.0, %v707
  %709 = vdwg.mxu0
  %v711 = vrot.slane %v708, 4
  %v713 = vadd.f32 %v610, %v711
  %v714 = vtanh.pop %v713
  %v715 = vmul.f32 %v714, %v37
  %v716 = vadd.f32 %v715, %v38
  %v718 = vrot.slane %v677, 6
  %v720 = vmul.f32 %v716, %v718
  %722 = vrot.lane.b32.xlu0 %v716, 64
  %v723 = vpop.permute.xlu0 %722
  %v725 = vmul.f32 %v716, %v723
  %727 = vrot.lane.b32.xlu0 %v725, 32
  %v728 = vpop.permute.xlu0 %727
  %v730 = vadd.f32 %v720, %v728
  %v731 = vtanh.pop %v730
  %733 = vrot.lane.b32.xlu0 %v731, 64
  %v734 = vpop.permute.xlu0 %733
  %v736 = vmul.f32 %v716, %v734
  %v738 = vrot.slane %v736, 4
  %739 = vrot.lane.b32.xlu0 %v738, 32
  %v740 = vpop.permute.xlu0 %739
  %v741 = vsel %vm66, %v740, 0
  %743 = vmatpush.msra.mxu0 0.0
  %744 = vmatpush.msra.mxu0 0.0
  %745 = vmatpush.msra.mxu0 0.0
  %746 = vmatpush.msra.mxu0 0.0
  %747 = vmatpush.msra.mxu0 0.0
  %748 = vmatpush.msra.mxu0 0.0
  %749 = vmatpush.msra.mxu0 0.0
  %750 = vmatpush.msra.mxu0 0.0
  %751 = vmatpush.msra.mxu0 0.0
  %752 = vmatpush.msra.mxu0 0.0
  %753 = vmatpush.msra.mxu0 0.0
  %754 = vmatpush.msra.mxu0 0.0
  %755 = vmatpush.msra.mxu0 %v559
  %756 = vmatpush.msra.mxu0 %v558
  %757 = vmatpush.msra.mxu0 %v557
  %758 = vmatpush.msra.mxu0 %v556
  %759 = vmatmul.f32.gmra.mxu0 %v741
  %v760 = vpop.f32.mrf.mxu0
  %v761 = vadd.f32 0.0, %v760
  %762 = vdwg.mxu0
  %v764 = vrot.slane %v761, 2
  %v766 = vadd.f32 %v610, %v764
  %v767 = vtanh.pop %v766
  %v768 = vmul.f32 %v767, %v37
  %v769 = vadd.f32 %v768, %v38
  %v771 = vrot.slane %v730, 6
  %v773 = vmul.f32 %v769, %v771
  %775 = vrot.lane.b32.xlu0 %v769, 64
  %v776 = vpop.permute.xlu0 %775
  %v778 = vmul.f32 %v769, %v776
  %780 = vrot.lane.b32.xlu0 %v778, 32
  %v781 = vpop.permute.xlu0 %780
  %v783 = vadd.f32 %v773, %v781
  %v784 = vtanh.pop %v783
  %786 = vrot.lane.b32.xlu0 %v784, 64
  %v787 = vpop.permute.xlu0 %786
  %v789 = vmul.f32 %v769, %v787
  %v791 = vrot.slane %v789, 6
  %792 = vrot.lane.b32.xlu0 %v791, 32
  %v793 = vpop.permute.xlu0 %792
  %v794 = vsel %vm66, %v793, 0
  %796 = vmatpush.msra.mxu0 0.0
  %797 = vmatpush.msra.mxu0 0.0
  %798 = vmatpush.msra.mxu0 0.0
  %799 = vmatpush.msra.mxu0 0.0
  %800 = vmatpush.msra.mxu0 0.0
  %801 = vmatpush.msra.mxu0 0.0
  %802 = vmatpush.msra.mxu0 0.0
  %803 = vmatpush.msra.mxu0 0.0
  %804 = vmatpush.msra.mxu0 0.0
  %805 = vmatpush.msra.mxu0 0.0
  %806 = vmatpush.msra.mxu0 0.0
  %807 = vmatpush.msra.mxu0 0.0
  %808 = vmatpush.msra.mxu0 %v559
  %809 = vmatpush.msra.mxu0 %v558
  %810 = vmatpush.msra.mxu0 %v557
  %811 = vmatpush.msra.mxu0 %v556
  %812 = vmatmul.f32.gmra.mxu0 %v794
  %v813 = vpop.f32.mrf.mxu0
  %v814 = vadd.f32 0.0, %v813
  %815 = vdwg.mxu0
  %v816 = vadd.f32 %v611, %v814
  %v817 = vtanh.pop %v816
  %v818 = vmul.f32 %v817, %v37
  %v819 = vadd.f32 %v818, %v38
  %v821 = vrot.slane %v783, 6
  %v823 = vmul.f32 %v819, %v821
  %825 = vrot.lane.b32.xlu0 %v819, 64
  %v826 = vpop.permute.xlu0 %825
  %v828 = vmul.f32 %v819, %v826
  %830 = vrot.lane.b32.xlu0 %v828, 32
  %v831 = vpop.permute.xlu0 %830
  %v833 = vadd.f32 %v823, %v831
  %v834 = vtanh.pop %v833
  %836 = vrot.lane.b32.xlu0 %v834, 64
  %v837 = vpop.permute.xlu0 %836
  %v839 = vmul.f32 %v819, %v837
  %841 = vrot.lane.b32.xlu0 %v839, 32
  %v842 = vpop.permute.xlu0 %841
  %v843 = vsel %vm66, %v842, 0
  %845 = vmatpush.msra.mxu0 0.0
  %846 = vmatpush.msra.mxu0 0.0
  %847 = vmatpush.msra.mxu0 0.0
  %848 = vmatpush.msra.mxu0 0.0
  %849 = vmatpush.msra.mxu0 0.0
  %850 = vmatpush.msra.mxu0 0.0
  %851 = vmatpush.msra.mxu0 0.0
  %852 = vmatpush.msra.mxu0 0.0
  %853 = vmatpush.msra.mxu0 0.0
  %854 = vmatpush.msra.mxu0 0.0
  %855 = vmatpush.msra.mxu0 0.0
  %856 = vmatpush.msra.mxu0 0.0
  %857 = vmatpush.msra.mxu0 %v559
  %858 = vmatpush.msra.mxu0 %v558
  %859 = vmatpush.msra.mxu0 %v557
  %860 = vmatpush.msra.mxu0 %v556
  %861 = vmatmul.f32.gmra.mxu0 %v843
  %v862 = vpop.f32.mrf.mxu0
  %v863 = vadd.f32 0.0, %v862
  %864 = vdwg.mxu0
  %v866 = vrot.slane %v863, 6
  %v868 = vadd.f32 %v611, %v866
  %v869 = vtanh.pop %v868
  %v870 = vmul.f32 %v869, %v37
  %v871 = vadd.f32 %v870, %v38
  %v873 = vrot.slane %v833, 6
  %v875 = vmul.f32 %v871, %v873
  %877 = vrot.lane.b32.xlu0 %v871, 64
  %v878 = vpop.permute.xlu0 %877
  %v880 = vmul.f32 %v871, %v878
  %882 = vrot.lane.b32.xlu0 %v880, 32
  %v883 = vpop.permute.xlu0 %882
  %v885 = vadd.f32 %v875, %v883
  %v886 = vtanh.pop %v885
  %888 = vrot.lane.b32.xlu0 %v886, 64
  %v889 = vpop.permute.xlu0 %888
  %v891 = vmul.f32 %v871, %v889
  %v893 = vrot.slane %v891, 2
  %894 = vrot.lane.b32.xlu0 %v893, 32
  %v895 = vpop.permute.xlu0 %894
  %v896 = vsel %vm66, %v895, 0
  %898 = vmatpush.msra.mxu0 0.0
  %899 = vmatpush.msra.mxu0 0.0
  %900 = vmatpush.msra.mxu0 0.0
  %901 = vmatpush.msra.mxu0 0.0
  %902 = vmatpush.msra.mxu0 0.0
  %903 = vmatpush.msra.mxu0 0.0
  %904 = vmatpush.msra.mxu0 0.0
  %905 = vmatpush.msra.mxu0 0.0
  %906 = vmatpush.msra.mxu0 0.0
  %907 = vmatpush.msra.mxu0 0.0
  %908 = vmatpush.msra.mxu0 0.0
  %909 = vmatpush.msra.mxu0 0.0
  %910 = vmatpush.msra.mxu0 %v559
  %911 = vmatpush.msra.mxu0 %v558
  %912 = vmatpush.msra.mxu0 %v557
  %913 = vmatpush.msra.mxu0 %v556
  %914 = vmatmul.f32.gmra.mxu0 %v896
  %v915 = vpop.f32.mrf.mxu0
  %v916 = vadd.f32 0.0, %v915
  %917 = vdwg.mxu0
  %v919 = vrot.slane %v916, 4
  %v921 = vadd.f32 %v611, %v919
  %v922 = vtanh.pop %v921
  %v923 = vmul.f32 %v922, %v37
  %v924 = vadd.f32 %v923, %v38
  %v926 = vrot.slane %v885, 6
  %v928 = vmul.f32 %v924, %v926
  %930 = vrot.lane.b32.xlu0 %v924, 64
  %v931 = vpop.permute.xlu0 %930
  %v933 = vmul.f32 %v924, %v931
  %935 = vrot.lane.b32.xlu0 %v933, 32
  %v936 = vpop.permute.xlu0 %935
  %v938 = vadd.f32 %v928, %v936
  %v939 = vtanh.pop %v938
  %941 = vrot.lane.b32.xlu0 %v939, 64
  %v942 = vpop.permute.xlu0 %941
  %v944 = vmul.f32 %v924, %v942
  %v946 = vrot.slane %v944, 4
  %947 = vrot.lane.b32.xlu0 %v946, 32
  %v948 = vpop.permute.xlu0 %947
  %v949 = vsel %vm66, %v948, 0
  %951 = vmatpush.msra.mxu0 0.0
  %952 = vmatpush.msra.mxu0 0.0
  %953 = vmatpush.msra.mxu0 0.0
  %954 = vmatpush.msra.mxu0 0.0
  %955 = vmatpush.msra.mxu0 0.0
  %956 = vmatpush.msra.mxu0 0.0
  %957 = vmatpush.msra.mxu0 0.0
  %958 = vmatpush.msra.mxu0 0.0
  %959 = vmatpush.msra.mxu0 0.0
  %960 = vmatpush.msra.mxu0 0.0
  %961 = vmatpush.msra.mxu0 0.0
  %962 = vmatpush.msra.mxu0 0.0
  %963 = vmatpush.msra.mxu0 %v559
  %964 = vmatpush.msra.mxu0 %v558
  %965 = vmatpush.msra.mxu0 %v557
  %966 = vmatpush.msra.mxu0 %v556
  %967 = vmatmul.f32.gmra.mxu0 %v949
  %v968 = vpop.f32.mrf.mxu0
  %v969 = vadd.f32 0.0, %v968
  %970 = vdwg.mxu0
  %v972 = vrot.slane %v969, 2
  %v974 = vadd.f32 %v611, %v972
  %v975 = vtanh.pop %v974
  %v976 = vmul.f32 %v975, %v37
  %v977 = vadd.f32 %v976, %v38
  %v979 = vrot.slane %v938, 6
  %v981 = vmul.f32 %v977, %v979
  %983 = vrot.lane.b32.xlu0 %v977, 64
  %v984 = vpop.permute.xlu0 %983
  %v986 = vmul.f32 %v977, %v984
  %988 = vrot.lane.b32.xlu0 %v986, 32
  %v989 = vpop.permute.xlu0 %988
  %v991 = vadd.f32 %v981, %v989
  %v992 = vtanh.pop %v991
  %994 = vrot.lane.b32.xlu0 %v992, 64
  %v995 = vpop.permute.xlu0 %994
  %v997 = vmul.f32 %v977, %v995
  %v998 = vsel %vm106, %v631, %v683
  %v999 = vsel %vm108, %v998, %v736
  %v1000 = vsel %vm110, %v999, %v789
  %v1001 = vsel %vm106, %v839, %v891
  %v1002 = vsel %vm108, %v1001, %v944
  %v1003 = vsel %vm110, %v1002, %v997
  %v1005 = vrot.slane %v997, 6
  %v1007 = vrot.slane %v944, 2
  %v1009 = vrot.slane %v891, 6
  %v1011 = vrot.slane %v839, 2
  %v1014 = vrot.slane %v736, 2
  %v1016 = vrot.slane %v683, 6
  %v1018 = vrot.slane %v631, 2
  %v1020 = vsel %vm106, %v1005, %v1007
  %v1021 = vsel %vm108, %v1020, %v1009
  %v1022 = vsel %vm110, %v1021, %v1011
  %v1023 = vsel %vm106, %v791, %v1014
  %v1024 = vsel %vm108, %v1023, %v1016
  %v1025 = vsel %vm110, %v1024, %v1018
  %1028 = vrot.lane.b32.xlu0 %v1000, 32
  %v1029 = vpop.permute.xlu0 %1028
  %1030 = vrot.lane.b32.xlu0 %v1003, 32
  %v1031 = vpop.permute.xlu0 %1030
  %1036 = vrot.lane.b32.xlu0 %v1022, 32
  %v1037 = vpop.permute.xlu0 %1036
  %1038 = vrot.lane.b32.xlu0 %v1025, 32
  %v1039 = vpop.permute.xlu0 %1038
  %v1042 = vsel %vm547, %v1029, %v1037
  %v1043 = vsel %vm547, %v1031, %v1039
  %s1044 = scalar_lea.vmem %s1, 64
  %v1045 = vld [vmem:[%s1044] sm:$0xff]
  %v1046 = vld [vmem:[%s1044 + $0x8] sm:$0xff]
  %v1047 = vld [vmem:[%s1044 + $0x10] sm:$0xff]
  %v1048 = vld [vmem:[%s1044 + $0x18] sm:$0xff]
  %s1049 = scalar_lea.vmem %s2, 64
  %v1050 = vld [vmem:[%s1049] sm:$0xff]
  %v1051 = vld [vmem:[%s1049 + $0x8] sm:$0xff]
  %v1052 = vld [vmem:[%s1049 + $0x10] sm:$0xff]
  %v1053 = vld [vmem:[%s1049 + $0x18] sm:$0xff]
  %s1054 = scalar_lea.vmem %s3, 2
  %v1055 = vld [vmem:[%s1054] sm:$0x1]
  %v1057 = vperm.slane %v1055, 0
  %v1060 = vsel %vm66, %v1042, 0
  %v1063 = vsel %vm66, %v1043, 0
  %1065 = vmatpush.msra.mxu0 0.0
  %1066 = vmatpush.msra.mxu0 0.0
  %1067 = vmatpush.msra.mxu0 0.0
  %1068 = vmatpush.msra.mxu0 0.0
  %1069 = vmatpush.msra.mxu0 0.0
  %1070 = vmatpush.msra.mxu0 0.0
  %1071 = vmatpush.msra.mxu0 0.0
  %1072 = vmatpush.msra.mxu0 0.0
  %1073 = vmatpush.msra.mxu0 0.0
  %1074 = vmatpush.msra.mxu0 0.0
  %1075 = vmatpush.msra.mxu0 0.0
  %1076 = vmatpush.msra.mxu0 0.0
  %1077 = vmatpush.msra.mxu0 %v1048
  %1078 = vmatpush.msra.mxu0 %v1047
  %1079 = vmatpush.msra.mxu0 %v1046
  %1080 = vmatpush.msra.mxu0 %v1045
  %1081 = vmatmul.f32.gmra.mxu0 %v1060
  %v1082 = vpop.f32.mrf.mxu0
  %v1083 = vadd.f32 %v1057, %v1082
  %1084 = vmatmul.f32.gmra.mxu0 %v1063
  %v1085 = vpop.f32.mrf.mxu0
  %v1086 = vadd.f32 %v1057, %v1085
  %1087 = vdwg.mxu0
  %v1089 = vrot.slane %v1086, 6
  %v1091 = vrot.slane %v1086, 2
  %v1094 = vrot.slane %v1083, 6
  %v1096 = vrot.slane %v1083, 2
  %v1098 = vsel %vm106, %v1089, %v1091
  %v1099 = vsel %vm108, %v1098, %v1089
  %v1100 = vsel %vm110, %v1099, %v1091
  %v1101 = vsel %vm106, %v1094, %v1096
  %v1102 = vsel %vm108, %v1101, %v1094
  %v1103 = vsel %vm110, %v1102, %v1096
  %v1104 = vsel %vm51, %v1083, %v1100
  %v1105 = vsel %vm51, %v1086, %v1103
  %v1106 = vtanh.pop %v1104
  %v1107 = vmul.f32 %v1106, %v37
  %v1108 = vadd.f32 %v1107, %v38
  %v1109 = vmul.f32 %v1108, 0.0
  %1111 = vrot.lane.b32.xlu0 %v1108, 64
  %v1112 = vpop.permute.xlu0 %1111
  %v1114 = vmul.f32 %v1108, %v1112
  %1116 = vrot.lane.b32.xlu0 %v1114, 32
  %v1117 = vpop.permute.xlu0 %1116
  %v1119 = vadd.f32 %v1109, %v1117
  %v1120 = vtanh.pop %v1119
  %1122 = vrot.lane.b32.xlu0 %v1120, 64
  %v1123 = vpop.permute.xlu0 %1122
  %v1125 = vmul.f32 %v1108, %v1123
  %1127 = vrot.lane.b32.xlu0 %v1125, 32
  %v1128 = vpop.permute.xlu0 %1127
  %v1129 = vsel %vm66, %v1128, 0
  %1131 = vmatpush.msra.mxu0 0.0
  %1132 = vmatpush.msra.mxu0 0.0
  %1133 = vmatpush.msra.mxu0 0.0
  %1134 = vmatpush.msra.mxu0 0.0
  %1135 = vmatpush.msra.mxu0 0.0
  %1136 = vmatpush.msra.mxu0 0.0
  %1137 = vmatpush.msra.mxu0 0.0
  %1138 = vmatpush.msra.mxu0 0.0
  %1139 = vmatpush.msra.mxu0 0.0
  %1140 = vmatpush.msra.mxu0 0.0
  %1141 = vmatpush.msra.mxu0 0.0
  %1142 = vmatpush.msra.mxu0 0.0
  %1143 = vmatpush.msra.mxu0 %v1053
  %1144 = vmatpush.msra.mxu0 %v1052
  %1145 = vmatpush.msra.mxu0 %v1051
  %1146 = vmatpush.msra.mxu0 %v1050
  %1147 = vmatmul.f32.gmra.mxu0 %v1129
  %v1148 = vpop.f32.mrf.mxu0
  %v1149 = vadd.f32 0.0, %v1148
  %1150 = vdwg.mxu0
  %v1152 = vrot.slane %v1149, 6
  %v1154 = vadd.f32 %v1104, %v1152
  %v1155 = vtanh.pop %v1154
  %v1156 = vmul.f32 %v1155, %v37
  %v1157 = vadd.f32 %v1156, %v38
  %v1159 = vrot.slane %v1119, 6
  %v1161 = vmul.f32 %v1157, %v1159
  %1163 = vrot.lane.b32.xlu0 %v1157, 64
  %v1164 = vpop.permute.xlu0 %1163
  %v1166 = vmul.f32 %v1157, %v1164
  %1168 = vrot.lane.b32.xlu0 %v1166, 32
  %v1169 = vpop.permute.xlu0 %1168
  %v1171 = vadd.f32 %v1161, %v1169
  %v1172 = vtanh.pop %v1171
  %1174 = vrot.lane.b32.xlu0 %v1172, 64
  %v1175 = vpop.permute.xlu0 %1174
  %v1177 = vmul.f32 %v1157, %v1175
  %v1179 = vrot.slane %v1177, 2
  %1180 = vrot.lane.b32.xlu0 %v1179, 32
  %v1181 = vpop.permute.xlu0 %1180
  %v1182 = vsel %vm66, %v1181, 0
  %1184 = vmatpush.msra.mxu0 0.0
  %1185 = vmatpush.msra.mxu0 0.0
  %1186 = vmatpush.msra.mxu0 0.0
  %1187 = vmatpush.msra.mxu0 0.0
  %1188 = vmatpush.msra.mxu0 0.0
  %1189 = vmatpush.msra.mxu0 0.0
  %1190 = vmatpush.msra.mxu0 0.0
  %1191 = vmatpush.msra.mxu0 0.0
  %1192 = vmatpush.msra.mxu0 0.0
  %1193 = vmatpush.msra.mxu0 0.0
  %1194 = vmatpush.msra.mxu0 0.0
  %1195 = vmatpush.msra.mxu0 0.0
  %1196 = vmatpush.msra.mxu0 %v1053
  %1197 = vmatpush.msra.mxu0 %v1052
  %1198 = vmatpush.msra.mxu0 %v1051
  %1199 = vmatpush.msra.mxu0 %v1050
  %1200 = vmatmul.f32.gmra.mxu0 %v1182
  %v1201 = vpop.f32.mrf.mxu0
  %v1202 = vadd.f32 0.0, %v1201
  %1203 = vdwg.mxu0
  %v1205 = vrot.slane %v1202, 4
  %v1207 = vadd.f32 %v1104, %v1205
  %v1208 = vtanh.pop %v1207
  %v1209 = vmul.f32 %v1208, %v37
  %v1210 = vadd.f32 %v1209, %v38
  %v1212 = vrot.slane %v1171, 6
  %v1214 = vmul.f32 %v1210, %v1212
  %1216 = vrot.lane.b32.xlu0 %v1210, 64
  %v1217 = vpop.permute.xlu0 %1216
  %v1219 = vmul.f32 %v1210, %v1217
  %1221 = vrot.lane.b32.xlu0 %v1219, 32
  %v1222 = vpop.permute.xlu0 %1221
  %v1224 = vadd.f32 %v1214, %v1222
  %v1225 = vtanh.pop %v1224
  %1227 = vrot.lane.b32.xlu0 %v1225, 64
  %v1228 = vpop.permute.xlu0 %1227
  %v1230 = vmul.f32 %v1210, %v1228
  %v1232 = vrot.slane %v1230, 4
  %1233 = vrot.lane.b32.xlu0 %v1232, 32
  %v1234 = vpop.permute.xlu0 %1233
  %v1235 = vsel %vm66, %v1234, 0
  %1237 = vmatpush.msra.mxu0 0.0
  %1238 = vmatpush.msra.mxu0 0.0
  %1239 = vmatpush.msra.mxu0 0.0
  %1240 = vmatpush.msra.mxu0 0.0
  %1241 = vmatpush.msra.mxu0 0.0
  %1242 = vmatpush.msra.mxu0 0.0
  %1243 = vmatpush.msra.mxu0 0.0
  %1244 = vmatpush.msra.mxu0 0.0
  %1245 = vmatpush.msra.mxu0 0.0
  %1246 = vmatpush.msra.mxu0 0.0
  %1247 = vmatpush.msra.mxu0 0.0
  %1248 = vmatpush.msra.mxu0 0.0
  %1249 = vmatpush.msra.mxu0 %v1053
  %1250 = vmatpush.msra.mxu0 %v1052
  %1251 = vmatpush.msra.mxu0 %v1051
  %1252 = vmatpush.msra.mxu0 %v1050
  %1253 = vmatmul.f32.gmra.mxu0 %v1235
  %v1254 = vpop.f32.mrf.mxu0
  %v1255 = vadd.f32 0.0, %v1254
  %1256 = vdwg.mxu0
  %v1258 = vrot.slane %v1255, 2
  %v1260 = vadd.f32 %v1104, %v1258
  %v1261 = vtanh.pop %v1260
  %v1262 = vmul.f32 %v1261, %v37
  %v1263 = vadd.f32 %v1262, %v38
  %v1265 = vrot.slane %v1224, 6
  %v1267 = vmul.f32 %v1263, %v1265
  %1269 = vrot.lane.b32.xlu0 %v1263, 64
  %v1270 = vpop.permute.xlu0 %1269
  %v1272 = vmul.f32 %v1263, %v1270
  %1274 = vrot.lane.b32.xlu0 %v1272, 32
  %v1275 = vpop.permute.xlu0 %1274
  %v1277 = vadd.f32 %v1267, %v1275
  %v1278 = vtanh.pop %v1277
  %1280 = vrot.lane.b32.xlu0 %v1278, 64
  %v1281 = vpop.permute.xlu0 %1280
  %v1283 = vmul.f32 %v1263, %v1281
  %v1285 = vrot.slane %v1283, 6
  %1286 = vrot.lane.b32.xlu0 %v1285, 32
  %v1287 = vpop.permute.xlu0 %1286
  %v1288 = vsel %vm66, %v1287, 0
  %1290 = vmatpush.msra.mxu0 0.0
  %1291 = vmatpush.msra.mxu0 0.0
  %1292 = vmatpush.msra.mxu0 0.0
  %1293 = vmatpush.msra.mxu0 0.0
  %1294 = vmatpush.msra.mxu0 0.0
  %1295 = vmatpush.msra.mxu0 0.0
  %1296 = vmatpush.msra.mxu0 0.0
  %1297 = vmatpush.msra.mxu0 0.0
  %1298 = vmatpush.msra.mxu0 0.0
  %1299 = vmatpush.msra.mxu0 0.0
  %1300 = vmatpush.msra.mxu0 0.0
  %1301 = vmatpush.msra.mxu0 0.0
  %1302 = vmatpush.msra.mxu0 %v1053
  %1303 = vmatpush.msra.mxu0 %v1052
  %1304 = vmatpush.msra.mxu0 %v1051
  %1305 = vmatpush.msra.mxu0 %v1050
  %1306 = vmatmul.f32.gmra.mxu0 %v1288
  %v1307 = vpop.f32.mrf.mxu0
  %v1308 = vadd.f32 0.0, %v1307
  %1309 = vdwg.mxu0
  %v1310 = vadd.f32 %v1105, %v1308
  %v1311 = vtanh.pop %v1310
  %v1312 = vmul.f32 %v1311, %v37
  %v1313 = vadd.f32 %v1312, %v38
  %v1315 = vrot.slane %v1277, 6
  %v1317 = vmul.f32 %v1313, %v1315
  %1319 = vrot.lane.b32.xlu0 %v1313, 64
  %v1320 = vpop.permute.xlu0 %1319
  %v1322 = vmul.f32 %v1313, %v1320
  %1324 = vrot.lane.b32.xlu0 %v1322, 32
  %v1325 = vpop.permute.xlu0 %1324
  %v1327 = vadd.f32 %v1317, %v1325
  %v1328 = vtanh.pop %v1327
  %1330 = vrot.lane.b32.xlu0 %v1328, 64
  %v1331 = vpop.permute.xlu0 %1330
  %v1333 = vmul.f32 %v1313, %v1331
  %1335 = vrot.lane.b32.xlu0 %v1333, 32
  %v1336 = vpop.permute.xlu0 %1335
  %v1337 = vsel %vm66, %v1336, 0
  %1339 = vmatpush.msra.mxu0 0.0
  %1340 = vmatpush.msra.mxu0 0.0
  %1341 = vmatpush.msra.mxu0 0.0
  %1342 = vmatpush.msra.mxu0 0.0
  %1343 = vmatpush.msra.mxu0 0.0
  %1344 = vmatpush.msra.mxu0 0.0
  %1345 = vmatpush.msra.mxu0 0.0
  %1346 = vmatpush.msra.mxu0 0.0
  %1347 = vmatpush.msra.mxu0 0.0
  %1348 = vmatpush.msra.mxu0 0.0
  %1349 = vmatpush.msra.mxu0 0.0
  %1350 = vmatpush.msra.mxu0 0.0
  %1351 = vmatpush.msra.mxu0 %v1053
  %1352 = vmatpush.msra.mxu0 %v1052
  %1353 = vmatpush.msra.mxu0 %v1051
  %1354 = vmatpush.msra.mxu0 %v1050
  %1355 = vmatmul.f32.gmra.mxu0 %v1337
  %v1356 = vpop.f32.mrf.mxu0
  %v1357 = vadd.f32 0.0, %v1356
  %1358 = vdwg.mxu0
  %v1360 = vrot.slane %v1357, 6
  %v1362 = vadd.f32 %v1105, %v1360
  %v1363 = vtanh.pop %v1362
  %v1364 = vmul.f32 %v1363, %v37
  %v1365 = vadd.f32 %v1364, %v38
  %v1367 = vrot.slane %v1327, 6
  %v1369 = vmul.f32 %v1365, %v1367
  %1371 = vrot.lane.b32.xlu0 %v1365, 64
  %v1372 = vpop.permute.xlu0 %1371
  %v1374 = vmul.f32 %v1365, %v1372
  %1376 = vrot.lane.b32.xlu0 %v1374, 32
  %v1377 = vpop.permute.xlu0 %1376
  %v1379 = vadd.f32 %v1369, %v1377
  %v1380 = vtanh.pop %v1379
  %1382 = vrot.lane.b32.xlu0 %v1380, 64
  %v1383 = vpop.permute.xlu0 %1382
  %v1385 = vmul.f32 %v1365, %v1383
  %v1387 = vrot.slane %v1385, 2
  %1388 = vrot.lane.b32.xlu0 %v1387, 32
  %v1389 = vpop.permute.xlu0 %1388
  %v1390 = vsel %vm66, %v1389, 0
  %1392 = vmatpush.msra.mxu0 0.0
  %1393 = vmatpush.msra.mxu0 0.0
  %1394 = vmatpush.msra.mxu0 0.0
  %1395 = vmatpush.msra.mxu0 0.0
  %1396 = vmatpush.msra.mxu0 0.0
  %1397 = vmatpush.msra.mxu0 0.0
  %1398 = vmatpush.msra.mxu0 0.0
  %1399 = vmatpush.msra.mxu0 0.0
  %1400 = vmatpush.msra.mxu0 0.0
  %1401 = vmatpush.msra.mxu0 0.0
  %1402 = vmatpush.msra.mxu0 0.0
  %1403 = vmatpush.msra.mxu0 0.0
  %1404 = vmatpush.msra.mxu0 %v1053
  %1405 = vmatpush.msra.mxu0 %v1052
  %1406 = vmatpush.msra.mxu0 %v1051
  %1407 = vmatpush.msra.mxu0 %v1050
  %1408 = vmatmul.f32.gmra.mxu0 %v1390
  %v1409 = vpop.f32.mrf.mxu0
  %v1410 = vadd.f32 0.0, %v1409
  %1411 = vdwg.mxu0
  %v1413 = vrot.slane %v1410, 4
  %v1415 = vadd.f32 %v1105, %v1413
  %v1416 = vtanh.pop %v1415
  %v1417 = vmul.f32 %v1416, %v37
  %v1418 = vadd.f32 %v1417, %v38
  %v1420 = vrot.slane %v1379, 6
  %v1422 = vmul.f32 %v1418, %v1420
  %1424 = vrot.lane.b32.xlu0 %v1418, 64
  %v1425 = vpop.permute.xlu0 %1424
  %v1427 = vmul.f32 %v1418, %v1425
  %1429 = vrot.lane.b32.xlu0 %v1427, 32
  %v1430 = vpop.permute.xlu0 %1429
  %v1432 = vadd.f32 %v1422, %v1430
  %v1433 = vtanh.pop %v1432
  %1435 = vrot.lane.b32.xlu0 %v1433, 64
  %v1436 = vpop.permute.xlu0 %1435
  %v1438 = vmul.f32 %v1418, %v1436
  %v1440 = vrot.slane %v1438, 4
  %1441 = vrot.lane.b32.xlu0 %v1440, 32
  %v1442 = vpop.permute.xlu0 %1441
  %v1443 = vsel %vm66, %v1442, 0
  %1445 = vmatpush.msra.mxu0 0.0
  %1446 = vmatpush.msra.mxu0 0.0
  %1447 = vmatpush.msra.mxu0 0.0
  %1448 = vmatpush.msra.mxu0 0.0
  %1449 = vmatpush.msra.mxu0 0.0
  %1450 = vmatpush.msra.mxu0 0.0
  %1451 = vmatpush.msra.mxu0 0.0
  %1452 = vmatpush.msra.mxu0 0.0
  %1453 = vmatpush.msra.mxu0 0.0
  %1454 = vmatpush.msra.mxu0 0.0
  %1455 = vmatpush.msra.mxu0 0.0
  %1456 = vmatpush.msra.mxu0 0.0
  %1457 = vmatpush.msra.mxu0 %v1053
  %1458 = vmatpush.msra.mxu0 %v1052
  %1459 = vmatpush.msra.mxu0 %v1051
  %1460 = vmatpush.msra.mxu0 %v1050
  %1461 = vmatmul.f32.gmra.mxu0 %v1443
  %v1462 = vpop.f32.mrf.mxu0
  %v1463 = vadd.f32 0.0, %v1462
  %1464 = vdwg.mxu0
  %v1466 = vrot.slane %v1463, 2
  %v1468 = vadd.f32 %v1105, %v1466
  %v1469 = vtanh.pop %v1468
  %v1470 = vmul.f32 %v1469, %v37
  %v1471 = vadd.f32 %v1470, %v38
  %v1473 = vrot.slane %v1432, 6
  %v1475 = vmul.f32 %v1471, %v1473
  %1477 = vrot.lane.b32.xlu0 %v1471, 64
  %v1478 = vpop.permute.xlu0 %1477
  %v1480 = vmul.f32 %v1471, %v1478
  %1482 = vrot.lane.b32.xlu0 %v1480, 32
  %v1483 = vpop.permute.xlu0 %1482
  %v1485 = vadd.f32 %v1475, %v1483
  %v1486 = vtanh.pop %v1485
  %1488 = vrot.lane.b32.xlu0 %v1486, 64
  %v1489 = vpop.permute.xlu0 %1488
  %v1491 = vmul.f32 %v1471, %v1489
  %v1492 = vsel %vm106, %v1125, %v1177
  %v1493 = vsel %vm108, %v1492, %v1230
  %v1494 = vsel %vm110, %v1493, %v1283
  %v1495 = vsel %vm106, %v1333, %v1385
  %v1496 = vsel %vm108, %v1495, %v1438
  %v1497 = vsel %vm110, %v1496, %v1491
  %v1499 = vrot.slane %v1491, 6
  %v1501 = vrot.slane %v1438, 2
  %v1503 = vrot.slane %v1385, 6
  %v1505 = vrot.slane %v1333, 2
  %v1508 = vrot.slane %v1230, 2
  %v1510 = vrot.slane %v1177, 6
  %v1512 = vrot.slane %v1125, 2
  %v1514 = vsel %vm106, %v1499, %v1501
  %v1515 = vsel %vm108, %v1514, %v1503
  %v1516 = vsel %vm110, %v1515, %v1505
  %v1517 = vsel %vm106, %v1285, %v1508
  %v1518 = vsel %vm108, %v1517, %v1510
  %v1519 = vsel %vm110, %v1518, %v1512
  %1522 = vrot.lane.b32.xlu0 %v1494, 32
  %v1523 = vpop.permute.xlu0 %1522
  %1524 = vrot.lane.b32.xlu0 %v1497, 32
  %v1525 = vpop.permute.xlu0 %1524
  %1530 = vrot.lane.b32.xlu0 %v1516, 32
  %v1531 = vpop.permute.xlu0 %1530
  %1532 = vrot.lane.b32.xlu0 %v1519, 32
  %v1533 = vpop.permute.xlu0 %1532
  %v1536 = vsel %vm547, %v1523, %v1531
  %v1537 = vsel %vm547, %v1525, %v1533
  %v1539 = vrot.slane %v1536, 1
  %v1541 = vrot.slane %v1536, 2
  %v1543 = vrot.slane %v1536, 3
  %v1546 = vrot.slane %v1537, 4
  %v1548 = vrot.slane %v1537, 5
  %v1550 = vrot.slane %v1537, 6
  %v1552 = vrot.slane %v1537, 7
  %v1554 = vrot.slane %v1536, 4
  %vm1556 = vcmask 1040384
  %v1557 = vsel %vm1556, %v1536, %v1539
  %v1558 = vsel %vm106, %v1557, %v1541
  %vm1559 = vcmask 1042432
  %v1560 = vsel %vm1559, %v1558, %v1543
  %v1561 = vsel %vm108, %v1560, %v1546
  %vm1562 = vcmask 1044480
  %v1563 = vsel %vm1562, %v1561, %v1548
  %v1564 = vsel %vm110, %v1563, %v1550
  %vm1565 = vcmask 1046528
  %v1566 = vsel %vm1565, %v1564, %v1552
  %v1567 = vsel %vm1556, %v1539, %v1541
  %v1568 = vsel %vm106, %v1567, %v1543
  %v1569 = vsel %vm1559, %v1568, %v1554
  %v1570 = vsel %vm108, %v1569, %v1548
  %v1571 = vsel %vm1562, %v1570, %v1550
  %v1572 = vsel %vm110, %v1571, %v1552
  %v1573 = vsel %vm1565, %v1572, %v1537
  %v1574 = vld [vmem:[%s4] sm:$0xff]
  %v1575 = vld [vmem:[%s4 + $0x8] sm:$0xff]
  %v1576 = vld [vmem:[%s4 + $0x10] sm:$0xff]
  %v1577 = vld [vmem:[%s4 + $0x18] sm:$0xff]
  %v1578 = vld [vmem:[%s5] sm:$0x1]
  %v1580 = vperm.slane %v1578, 0
  %v1583 = vsel %vm66, %v1566, 0
  %v1586 = vsel %vm66, %v1573, 0
  %1588 = vmatpush.msra.mxu0 0.0
  %1589 = vmatpush.msra.mxu0 0.0
  %1590 = vmatpush.msra.mxu0 0.0
  %1591 = vmatpush.msra.mxu0 0.0
  %1592 = vmatpush.msra.mxu0 0.0
  %1593 = vmatpush.msra.mxu0 0.0
  %1594 = vmatpush.msra.mxu0 0.0
  %1595 = vmatpush.msra.mxu0 0.0
  %1596 = vmatpush.msra.mxu0 0.0
  %1597 = vmatpush.msra.mxu0 0.0
  %1598 = vmatpush.msra.mxu0 0.0
  %1599 = vmatpush.msra.mxu0 0.0
  %1600 = vmatpush.msra.mxu0 %v1577
  %1601 = vmatpush.msra.mxu0 %v1576
  %1602 = vmatpush.msra.mxu0 %v1575
  %1603 = vmatpush.msra.mxu0 %v1574
  %1604 = vmatmul.f32.gmra.mxu0 %v1583
  %v1605 = vpop.f32.mrf.mxu0
  %v1606 = vadd.f32 %v1580, %v1605
  %1607 = vmatmul.f32.gmra.mxu0 %v1586
  %v1608 = vpop.f32.mrf.mxu0
  %v1609 = vadd.f32 %v1580, %v1608
  %1610 = vdwg.mxu0
  %v1611 = vmax.f32 %v1606, 0.0
  %v1612 = vmax.f32 %v1609, 0.0
  %v1613 = vld [vmem:[%s6] sm:$0xff]
  %v1614 = vld [vmem:[%s6 + $0x8] sm:$0xff]
  %v1615 = vld [vmem:[%s6 + $0x10] sm:$0xff]
  %v1616 = vld [vmem:[%s6 + $0x18] sm:$0xff]
  %v1617 = vld [vmem:[%s6 + $0x20] sm:$0xff]
  %v1618 = vld [vmem:[%s6 + $0x28] sm:$0xff]
  %v1619 = vld [vmem:[%s6 + $0x30] sm:$0xff]
  %v1620 = vld [vmem:[%s6 + $0x38] sm:$0xff]
  %v1621 = vld [vmem:[%s6 + $0x40] sm:$0xff]
  %v1622 = vld [vmem:[%s6 + $0x48] sm:$0xff]
  %v1623 = vld [vmem:[%s6 + $0x50] sm:$0xff]
  %v1624 = vld [vmem:[%s6 + $0x58] sm:$0xff]
  %v1625 = vld [vmem:[%s6 + $0x60] sm:$0xff]
  %v1626 = vld [vmem:[%s6 + $0x68] sm:$0xff]
  %v1627 = vld [vmem:[%s6 + $0x70] sm:$0xff]
  %v1628 = vld [vmem:[%s6 + $0x78] sm:$0xff]
  %v1629 = vld [vmem:[%s7] sm:$0x1]
  %v1631 = vperm.slane %v1629, 0
  %1633 = vmatpush.msra.mxu0 %v1628
  %1634 = vmatpush.msra.mxu0 %v1627
  %1635 = vmatpush.msra.mxu0 %v1626
  %1636 = vmatpush.msra.mxu0 %v1625
  %1637 = vmatpush.msra.mxu0 %v1624
  %1638 = vmatpush.msra.mxu0 %v1623
  %1639 = vmatpush.msra.mxu0 %v1622
  %1640 = vmatpush.msra.mxu0 %v1621
  %1641 = vmatpush.msra.mxu0 %v1620
  %1642 = vmatpush.msra.mxu0 %v1619
  %1643 = vmatpush.msra.mxu0 %v1618
  %1644 = vmatpush.msra.mxu0 %v1617
  %1645 = vmatpush.msra.mxu0 %v1616
  %1646 = vmatpush.msra.mxu0 %v1615
  %1647 = vmatpush.msra.mxu0 %v1614
  %1648 = vmatpush.msra.mxu0 %v1613
  %1649 = vmatmul.f32.gmra.mxu0 %v1611
  %v1650 = vpop.f32.mrf.mxu0
  %v1651 = vadd.f32 %v1631, %v1650
  %1652 = vmatmul.f32.gmra.mxu0 %v1612
  %v1653 = vpop.f32.mrf.mxu0
  %v1654 = vadd.f32 %v1631, %v1653
  %1655 = vdwg.mxu0
  %v1656 = vsel %vm66, %v1651, 1.0
  %v1657 = vsel %vm66, %v1654, 1.0
  %1660 = vrot.lane.b32.xlu0 %v1651, 96
  %v1661 = vpop.permute.xlu0 %1660
  %1662 = vrot.lane.b32.xlu0 %v1654, 96
  %v1663 = vpop.permute.xlu0 %1662
  %v1666 = vsel %vm66, %v1661, 1.0
  %v1667 = vsel %vm66, %v1663, 1.0
  %v1668 = vld [vmem:[%s8] sm:$0xff]
  %v1669 = vld [vmem:[%s8 + $0x8] sm:$0xff]
  %v1670 = vld [vmem:[%s8 + $0x10] sm:$0xff]
  %v1671 = vld [vmem:[%s8 + $0x18] sm:$0xff]
  %v1672 = vld [vmem:[%s8 + $0x20] sm:$0xff]
  %v1673 = vld [vmem:[%s8 + $0x28] sm:$0xff]
  %v1674 = vld [vmem:[%s8 + $0x30] sm:$0xff]
  %v1675 = vld [vmem:[%s8 + $0x38] sm:$0xff]
  %v1676 = vld [vmem:[%s8 + $0x40] sm:$0xff]
  %v1677 = vld [vmem:[%s8 + $0x48] sm:$0xff]
  %v1678 = vld [vmem:[%s8 + $0x50] sm:$0xff]
  %v1679 = vld [vmem:[%s8 + $0x58] sm:$0xff]
  %v1680 = vld [vmem:[%s8 + $0x60] sm:$0xff]
  %v1681 = vld [vmem:[%s8 + $0x68] sm:$0xff]
  %v1682 = vld [vmem:[%s8 + $0x70] sm:$0xff]
  %v1683 = vld [vmem:[%s8 + $0x78] sm:$0xff]
  %v1684 = vld [vmem:[%s8 + $0x80] sm:$0xff]
  %v1685 = vld [vmem:[%s8 + $0x88] sm:$0xff]
  %v1686 = vld [vmem:[%s8 + $0x90] sm:$0xff]
  %v1687 = vld [vmem:[%s8 + $0x98] sm:$0xff]
  %v1688 = vld [vmem:[%s8 + $0xa0] sm:$0x1f]
  %vm1689 = vcmask 269312
  %v1691 = vsel %vm1689, %v1668, 0
  %v1694 = vsel %vm1689, %v1669, 0
  %v1697 = vsel %vm1689, %v1670, 0
  %v1700 = vsel %vm1689, %v1671, 0
  %v1703 = vsel %vm1689, %v1672, 0
  %v1706 = vsel %vm1689, %v1673, 0
  %v1709 = vsel %vm1689, %v1674, 0
  %v1712 = vsel %vm1689, %v1675, 0
  %v1715 = vsel %vm1689, %v1676, 0
  %v1718 = vsel %vm1689, %v1677, 0
  %v1721 = vsel %vm1689, %v1678, 0
  %v1724 = vsel %vm1689, %v1679, 0
  %v1727 = vsel %vm1689, %v1680, 0
  %v1730 = vsel %vm1689, %v1681, 0
  %v1733 = vsel %vm1689, %v1682, 0
  %v1736 = vsel %vm1689, %v1683, 0
  %v1739 = vsel %vm1689, %v1684, 0
  %v1742 = vsel %vm1689, %v1685, 0
  %v1745 = vsel %vm1689, %v1686, 0
  %v1748 = vsel %vm1689, %v1687, 0
  %v1751 = vsel %vm1689, %v1688, 0
  %v1754 = vsel %vm1689, %v1666, 0
  %v1757 = vsel %vm1689, %v1667, 0
  %1759 = vmatpush.xpose.msra.mxu0 0.0
  %1760 = vmatpush.xpose.msra.mxu0 0.0
  %1761 = vmatpush.xpose.msra.mxu0 0.0
  %1762 = vmatpush.xpose.msra.mxu0 0.0
  %1763 = vmatpush.xpose.msra.mxu0 0.0
  %1764 = vmatpush.xpose.msra.mxu0 0.0
  %1765 = vmatpush.xpose.msra.mxu0 0.0
  %1766 = vmatpush.xpose.msra.mxu0 0.0
  %1767 = vmatpush.xpose.msra.mxu0 0.0
  %1768 = vmatpush.xpose.msra.mxu0 0.0
  %1769 = vmatpush.xpose.msra.mxu0 0.0
  %1770 = vmatpush.xpose.msra.mxu0 0.0
  %1771 = vmatpush.xpose.msra.mxu0 0.0
  %1772 = vmatpush.xpose.msra.mxu0 0.0
  %1773 = vmatpush.xpose.msra.mxu0 %v1757
  %1774 = vmatpush.xpose.msra.mxu0 %v1754
  %1775 = vmatmul.f32.gmra.mxu0 %v1691
  %v1776 = vpop.f32.mrf.mxu0
  %v1777 = vadd.f32 0.0, %v1776
  %1778 = vmatmul.f32.gmra.mxu0 %v1694
  %v1779 = vpop.f32.mrf.mxu0
  %v1780 = vadd.f32 0.0, %v1779
  %1781 = vmatmul.f32.gmra.mxu0 %v1697
  %v1782 = vpop.f32.mrf.mxu0
  %v1783 = vadd.f32 0.0, %v1782
  %1784 = vmatmul.f32.gmra.mxu0 %v1700
  %v1785 = vpop.f32.mrf.mxu0
  %v1786 = vadd.f32 0.0, %v1785
  %1787 = vmatmul.f32.gmra.mxu0 %v1703
  %v1788 = vpop.f32.mrf.mxu0
  %v1789 = vadd.f32 0.0, %v1788
  %1790 = vmatmul.f32.gmra.mxu0 %v1706
  %v1791 = vpop.f32.mrf.mxu0
  %v1792 = vadd.f32 0.0, %v1791
  %1793 = vmatmul.f32.gmra.mxu0 %v1709
  %v1794 = vpop.f32.mrf.mxu0
  %v1795 = vadd.f32 0.0, %v1794
  %1796 = vmatmul.f32.gmra.mxu0 %v1712
  %v1797 = vpop.f32.mrf.mxu0
  %v1798 = vadd.f32 0.0, %v1797
  %1799 = vmatmul.f32.gmra.mxu0 %v1715
  %v1800 = vpop.f32.mrf.mxu0
  %v1801 = vadd.f32 0.0, %v1800
  %1802 = vmatmul.f32.gmra.mxu0 %v1718
  %v1803 = vpop.f32.mrf.mxu0
  %v1804 = vadd.f32 0.0, %v1803
  %1805 = vmatmul.f32.gmra.mxu0 %v1721
  %v1806 = vpop.f32.mrf.mxu0
  %v1807 = vadd.f32 0.0, %v1806
  %1808 = vmatmul.f32.gmra.mxu0 %v1724
  %v1809 = vpop.f32.mrf.mxu0
  %v1810 = vadd.f32 0.0, %v1809
  %1811 = vmatmul.f32.gmra.mxu0 %v1727
  %v1812 = vpop.f32.mrf.mxu0
  %v1813 = vadd.f32 0.0, %v1812
  %1814 = vmatmul.f32.gmra.mxu0 %v1730
  %v1815 = vpop.f32.mrf.mxu0
  %v1816 = vadd.f32 0.0, %v1815
  %1817 = vmatmul.f32.gmra.mxu0 %v1733
  %v1818 = vpop.f32.mrf.mxu0
  %v1819 = vadd.f32 0.0, %v1818
  %1820 = vmatmul.f32.gmra.mxu0 %v1736
  %v1821 = vpop.f32.mrf.mxu0
  %v1822 = vadd.f32 0.0, %v1821
  %1823 = vmatmul.f32.gmra.mxu0 %v1739
  %v1824 = vpop.f32.mrf.mxu0
  %v1825 = vadd.f32 0.0, %v1824
  %1826 = vmatmul.f32.gmra.mxu0 %v1742
  %v1827 = vpop.f32.mrf.mxu0
  %v1828 = vadd.f32 0.0, %v1827
  %1829 = vmatmul.f32.gmra.mxu0 %v1745
  %v1830 = vpop.f32.mrf.mxu0
  %v1831 = vadd.f32 0.0, %v1830
  %1832 = vmatmul.f32.gmra.mxu0 %v1748
  %v1833 = vpop.f32.mrf.mxu0
  %v1834 = vadd.f32 0.0, %v1833
  %1835 = vmatmul.f32.gmra.mxu0 %v1751
  %v1836 = vpop.f32.mrf.mxu0
  %v1837 = vadd.f32 0.0, %v1836
  %1838 = vdwg.mxu0
  %v1840 = vsel %vm1689, %v1656, 0
  %v1843 = vsel %vm1689, %v1657, 0
  %v1846 = vsel %vm1556, %v1789, 0
  %1848 = vmatpush.msra.mxu0 0.0
  %1849 = vmatpush.msra.mxu0 0.0
  %1850 = vmatpush.msra.mxu0 0.0
  %1851 = vmatpush.msra.mxu0 0.0
  %1852 = vmatpush.msra.mxu0 0.0
  %1853 = vmatpush.msra.mxu0 0.0
  %1854 = vmatpush.msra.mxu0 0.0
  %1855 = vmatpush.msra.mxu0 0.0
  %1856 = vmatpush.msra.mxu0 0.0
  %1857 = vmatpush.msra.mxu0 0.0
  %1858 = vmatpush.msra.mxu0 0.0
  %1859 = vmatpush.msra.mxu0 %v1846
  %1860 = vmatpush.msra.mxu0 %v1786
  %1861 = vmatpush.msra.mxu0 %v1783
  %1862 = vmatpush.msra.mxu0 %v1780
  %1863 = vmatpush.msra.mxu0 %v1777
  %1864 = vmatmul.f32.gmra.mxu0 %v1840
  %v1865 = vpop.f32.mrf.mxu0
  %v1866 = vadd.f32 0.0, %v1865
  %1867 = vmatmul.f32.gmra.mxu0 %v1843
  %v1868 = vpop.f32.mrf.mxu0
  %v1869 = vadd.f32 0.0, %v1868
  %1870 = vdwg.mxu0
  %1872 = vrot.lane.b32.xlu0 %v1869, 120
  %v1873 = vpop.permute.xlu0 %1872
  %v1879 = vrot.slane %v1789, 1
  %v1880 = vrot.slane %v1792, 1
  %v1881 = vsel %vm1565, %v1879, %v1880
  %v1882 = vrot.slane %v1795, 1
  %v1883 = vsel %vm1565, %v1880, %v1882
  %v1884 = vrot.slane %v1798, 1
  %v1885 = vsel %vm1565, %v1882, %v1884
  %v1886 = vrot.slane %v1801, 1
  %v1887 = vsel %vm1565, %v1884, %v1886
  %v1892 = vsel %vm1556, %v1886, 0
  %1894 = vmatpush.msra.mxu0 0.0
  %1895 = vmatpush.msra.mxu0 0.0
  %1896 = vmatpush.msra.mxu0 0.0
  %1897 = vmatpush.msra.mxu0 0.0
  %1898 = vmatpush.msra.mxu0 0.0
  %1899 = vmatpush.msra.mxu0 0.0
  %1900 = vmatpush.msra.mxu0 0.0
  %1901 = vmatpush.msra.mxu0 0.0
  %1902 = vmatpush.msra.mxu0 0.0
  %1903 = vmatpush.msra.mxu0 0.0
  %1904 = vmatpush.msra.mxu0 0.0
  %1905 = vmatpush.msra.mxu0 %v1892
  %1906 = vmatpush.msra.mxu0 %v1887
  %1907 = vmatpush.msra.mxu0 %v1885
  %1908 = vmatpush.msra.mxu0 %v1883
  %1909 = vmatpush.msra.mxu0 %v1881
  %1910 = vmatmul.f32.gmra.mxu0 %v1840
  %v1911 = vpop.f32.mrf.mxu0
  %v1912 = vadd.f32 0.0, %v1911
  %1913 = vmatmul.f32.gmra.mxu0 %v1843
  %v1914 = vpop.f32.mrf.mxu0
  %v1915 = vadd.f32 0.0, %v1914
  %1916 = vdwg.mxu0
  %1918 = vrot.lane.b32.xlu0 %v1915, 120
  %v1919 = vpop.permute.xlu0 %1918
  %v1924 = vrot.slane %v1801, 2
  %v1925 = vrot.slane %v1804, 2
  %v1926 = vsel %vm110, %v1924, %v1925
  %v1927 = vrot.slane %v1807, 2
  %v1928 = vsel %vm110, %v1925, %v1927
  %v1929 = vrot.slane %v1810, 2
  %v1930 = vsel %vm110, %v1927, %v1929
  %v1931 = vrot.slane %v1813, 2
  %v1932 = vsel %vm110, %v1929, %v1931
  %v1937 = vsel %vm1556, %v1931, 0
  %1939 = vmatpush.msra.mxu0 0.0
  %1940 = vmatpush.msra.mxu0 0.0
  %1941 = vmatpush.msra.mxu0 0.0
  %1942 = vmatpush.msra.mxu0 0.0
  %1943 = vmatpush.msra.mxu0 0.0
  %1944 = vmatpush.msra.mxu0 0.0
  %1945 = vmatpush.msra.mxu0 0.0
  %1946 = vmatpush.msra.mxu0 0.0
  %1947 = vmatpush.msra.mxu0 0.0
  %1948 = vmatpush.msra.mxu0 0.0
  %1949 = vmatpush.msra.mxu0 0.0
  %1950 = vmatpush.msra.mxu0 %v1937
  %1951 = vmatpush.msra.mxu0 %v1932
  %1952 = vmatpush.msra.mxu0 %v1930
  %1953 = vmatpush.msra.mxu0 %v1928
  %1954 = vmatpush.msra.mxu0 %v1926
  %1955 = vmatmul.f32.gmra.mxu0 %v1840
  %v1956 = vpop.f32.mrf.mxu0
  %v1957 = vadd.f32 0.0, %v1956
  %1958 = vmatmul.f32.gmra.mxu0 %v1843
  %v1959 = vpop.f32.mrf.mxu0
  %v1960 = vadd.f32 0.0, %v1959
  %1961 = vdwg.mxu0
  %1963 = vrot.lane.b32.xlu0 %v1960, 120
  %v1964 = vpop.permute.xlu0 %1963
  %v1969 = vrot.slane %v1813, 3
  %v1970 = vrot.slane %v1816, 3
  %v1971 = vsel %vm1562, %v1969, %v1970
  %v1972 = vrot.slane %v1819, 3
  %v1973 = vsel %vm1562, %v1970, %v1972
  %v1974 = vrot.slane %v1822, 3
  %v1975 = vsel %vm1562, %v1972, %v1974
  %v1976 = vrot.slane %v1825, 3
  %v1977 = vsel %vm1562, %v1974, %v1976
  %v1982 = vsel %vm1556, %v1976, 0
  %1984 = vmatpush.msra.mxu0 0.0
  %1985 = vmatpush.msra.mxu0 0.0
  %1986 = vmatpush.msra.mxu0 0.0
  %1987 = vmatpush.msra.mxu0 0.0
  %1988 = vmatpush.msra.mxu0 0.0
  %1989 = vmatpush.msra.mxu0 0.0
  %1990 = vmatpush.msra.mxu0 0.0
  %1991 = vmatpush.msra.mxu0 0.0
  %1992 = vmatpush.msra.mxu0 0.0
  %1993 = vmatpush.msra.mxu0 0.0
  %1994 = vmatpush.msra.mxu0 0.0
  %1995 = vmatpush.msra.mxu0 %v1982
  %1996 = vmatpush.msra.mxu0 %v1977
  %1997 = vmatpush.msra.mxu0 %v1975
  %1998 = vmatpush.msra.mxu0 %v1973
  %1999 = vmatpush.msra.mxu0 %v1971
  %2000 = vmatmul.f32.gmra.mxu0 %v1840
  %v2001 = vpop.f32.mrf.mxu0
  %v2002 = vadd.f32 0.0, %v2001
  %2003 = vmatmul.f32.gmra.mxu0 %v1843
  %v2004 = vpop.f32.mrf.mxu0
  %v2005 = vadd.f32 0.0, %v2004
  %2006 = vdwg.mxu0
  %2008 = vrot.lane.b32.xlu0 %v2005, 120
  %v2009 = vpop.permute.xlu0 %2008
  %v2014 = vrot.slane %v1825, 4
  %v2015 = vrot.slane %v1828, 4
  %v2016 = vsel %vm108, %v2014, %v2015
  %v2017 = vrot.slane %v1831, 4
  %v2018 = vsel %vm108, %v2015, %v2017
  %v2019 = vrot.slane %v1834, 4
  %v2020 = vsel %vm108, %v2017, %v2019
  %v2021 = vrot.slane %v1837, 4
  %v2022 = vsel %vm108, %v2019, %v2021
  %v2027 = vsel %vm1556, %v2021, 0
  %2029 = vmatpush.msra.mxu0 0.0
  %2030 = vmatpush.msra.mxu0 0.0
  %2031 = vmatpush.msra.mxu0 0.0
  %2032 = vmatpush.msra.mxu0 0.0
  %2033 = vmatpush.msra.mxu0 0.0
  %2034 = vmatpush.msra.mxu0 0.0
  %2035 = vmatpush.msra.mxu0 0.0
  %2036 = vmatpush.msra.mxu0 0.0
  %2037 = vmatpush.msra.mxu0 0.0
  %2038 = vmatpush.msra.mxu0 0.0
  %2039 = vmatpush.msra.mxu0 0.0
  %2040 = vmatpush.msra.mxu0 %v2027
  %2041 = vmatpush.msra.mxu0 %v2022
  %2042 = vmatpush.msra.mxu0 %v2020
  %2043 = vmatpush.msra.mxu0 %v2018
  %2044 = vmatpush.msra.mxu0 %v2016
  %2045 = vmatmul.f32.gmra.mxu0 %v1840
  %v2046 = vpop.f32.mrf.mxu0
  %v2047 = vadd.f32 0.0, %v2046
  %2048 = vmatmul.f32.gmra.mxu0 %v1843
  %v2049 = vpop.f32.mrf.mxu0
  %v2050 = vadd.f32 0.0, %v2049
  %2051 = vdwg.mxu0
  %2053 = vrot.lane.b32.xlu0 %v2050, 120
  %v2054 = vpop.permute.xlu0 %2053
  %2056 = vrot.lane.b32.xlu0 %v1912, 8
  %v2057 = vpop.permute.xlu0 %2056
  %2058 = vrot.lane.b32.xlu0 %v1919, 8
  %v2059 = vpop.permute.xlu0 %2058
  %2063 = vrot.lane.b32.xlu0 %v1957, 16
  %v2064 = vpop.permute.xlu0 %2063
  %2065 = vrot.lane.b32.xlu0 %v1964, 16
  %v2066 = vpop.permute.xlu0 %2065
  %2070 = vrot.lane.b32.xlu0 %v2002, 24
  %v2071 = vpop.permute.xlu0 %2070
  %2072 = vrot.lane.b32.xlu0 %v2009, 24
  %v2073 = vpop.permute.xlu0 %2072
  %2077 = vrot.lane.b32.xlu0 %v2047, 32
  %v2078 = vpop.permute.xlu0 %2077
  %2079 = vrot.lane.b32.xlu0 %v2054, 32
  %v2080 = vpop.permute.xlu0 %2079
  %vm2083 = vcmask 64512
  %v2084 = vsel %vm2083, %v1866, %v2057
  %v2085 = vsel %vm2083, %v1873, %v2059
  %v2086 = vsel %vm547, %v2084, %v2064
  %v2087 = vsel %vm547, %v2085, %v2066
  %vm2088 = vcmask 195584
  %v2089 = vsel %vm2088, %v2086, %v2071
  %v2090 = vsel %vm2088, %v2087, %v2073
  %v2091 = vsel %vm66, %v2089, %v2078
  %v2092 = vsel %vm66, %v2090, %v2080
  %vm2093 = vcmask 326656
  %2094 = vst.msk [vmem:[%s9] sm:$0xff] %vm2093, %v2091
  %2095 = vst.msk [vmem:[%s9 + $0x8] sm:$0xff] %vm2093, %v2092
  // Predicated region
  $region38: #{vimq_forward.1} parent=0 // pred_check
    _
  $region39: #{vimq_forward.1} parent=0 // pred_check_branch
    %2097 = sbr.rel (0) target = $region41
  $region40: #{vimq_forward.1} parent=0 // pred_region
    _
  $region41: #{vimq_forward.1} parent=0 // pred_fallthru
    _
  // Predicated region
  $region42: #{vimq_forward.1} parent=0 // pred_check
    _
  $region43: #{vimq_forward.1} parent=0 // pred_check_branch
    %2099 = sbr.rel (0) target = $region45
  $region44: #{vimq_forward.1} parent=0 // pred_region
    _
  $region45: #{vimq_forward.1} parent=0 // pred_fallthru
    _

</llo_original>
